<compile_context>
chip_gen: v7x
topology: tpu7x:2x2x1
jax: 0.10.0
libtpu: 0.0.40
codegen_flags: <defaults>
</compile_context>

<pallas_src>
import math
from functools import partial

import jax
import jax.numpy as jnp
from jax.experimental import pallas as pl
from jax.experimental.pallas import tpu as pltpu


def _cross_attention_kernel(
    v_ref, k_ref, q_ref, mask_ref,
    wv_ref, bv_ref, wk_ref, bk_ref, wq_ref, bq_ref, wm_ref, bm_ref,
    out_ref,
    *, num_heads: int,
):
    bb, l_kv, clip = v_ref.shape
    _, l_q, llama = q_ref.shape
    mid = wv_ref.shape[1]
    d = mid // num_heads
    cdt = wv_ref.dtype                     # MXU compute dtype (bf16 by default)
    scale = 1.0 / math.sqrt(d)

    # ---- Input projections: big-M 2D matmuls on flattened (bb*L, feature)
    #      slabs. bf16 operands, f32 accumulation, f32 bias adds.
    v2 = v_ref[...].reshape(bb * l_kv, clip).astype(cdt)
    k2 = k_ref[...].reshape(bb * l_kv, clip).astype(cdt)
    q2 = q_ref[...].reshape(bb * l_q, llama).astype(cdt)

    vp = jnp.dot(v2, wv_ref[...], preferred_element_type=jnp.float32) + bv_ref[...]
    kp = jnp.dot(k2, wk_ref[...], preferred_element_type=jnp.float32) + bk_ref[...]
    qp = (jnp.dot(q2, wq_ref[...], preferred_element_type=jnp.float32)
          + bq_ref[...]) * scale           # fold 1/sqrt(d) once, not per head

    # Cast projections to the compute dtype once; per-head slicing below is on
    # lane-aligned bf16 views (d % 128 == 0 in the test config).
    vp_c = vp.astype(cdt)
    kp_c = kp.astype(cdt)
    qp_c = qp.astype(cdt)

    # mask: (bb, 1, 1, Lkv) int32, nonzero == masked -> (bb, 1, Lkv) bool,
    # broadcast over query rows (hoisted out of the head loop).
    masked = (mask_ref[...] != 0).reshape(bb, 1, l_kv)

    # ---- Per-head attention (static unroll over the small head count),
    #      batched over the bb batch elements with leading-batch einsums.
    #      The merge projection is accumulated per head, so heads never need
    #      to be concatenated / re-packed along the lane axis.
    acc = jnp.zeros((bb * l_q, llama), jnp.float32)
    for h in range(num_heads):
        lo = h * d
        qh = qp_c[:, lo:lo + d].reshape(bb, l_q, d)
        kh = kp_c[:, lo:lo + d].reshape(bb, l_kv, d)
        vh = vp_c[:, lo:lo + d].reshape(bb, l_kv, d)

        # Contraction over the last axis of both operands -> no explicit kh.T.
        scores = jnp.einsum("bqd,bkd->bqk", qh, kh,
                            preferred_element_type=jnp.float32)
        scores = jnp.where(masked, jnp.float32(-1000000000.0), scores)

        # Numerically-stable softmax over keys; reciprocal on the EUP slot.
        s_max = jnp.max(scores, axis=-1, keepdims=True)
        e = jnp.exp(scores - s_max)
        p = e * pl.reciprocal(jnp.sum(e, axis=-1, keepdims=True), approx=True)
        # Dropout(drop_rate) is identity in eval mode.

        ctx = jnp.einsum("bqk,bkd->bqd", p.astype(cdt), vh,
                         preferred_element_type=jnp.float32)      # (bb, Lq, d)
        ctx2 = ctx.reshape(bb * l_q, d).astype(cdt)

        # Merge projection, head h's (sublane-aligned) row block of W_merge.
        acc = acc + jnp.dot(ctx2, wm_ref[lo:lo + d, :],
                            preferred_element_type=jnp.float32)

    out = acc + bm_ref[...]
    out_ref[...] = out.reshape(bb, l_q, llama).astype(out_ref.dtype)


def _pick_batch_block(batch: int, max_block: int = 8) -> int:
    """Largest divisor of `batch` (<= max_block) that keeps >= 2 grid steps
    (so both v7x TensorCores stay busy when batch >= 2)."""
    best = 1
    for cand in range(2, min(batch, max_block) + 1):
        if batch % cand == 0 and batch // cand >= 2:
            best = cand
    return best


def cross_attention(v, k, q, mask, params, *, num_heads,
                    batch_block=None, compute_dtype=jnp.bfloat16):
    """Pallas-backed Cross_Attention forward (eval mode)."""
    B, Lkv, clip_size = v.shape
    _, Lq, llama_size = q.shape
    mid_size = params["wv"].shape[1]
    assert mid_size % num_heads == 0

    bb = batch_block if batch_block is not None else _pick_batch_block(B)
    assert B % bb == 0, "batch_block must divide the batch size"
    grid = (B // bb,)

    # Cast weights once outside the kernel: halves resident VMEM (key on v7x's
    # 64 MiB/TC) and feeds the MXU's native bf16 path. Biases stay f32 since
    # they are added to f32 accumulators.
    cd = compute_dtype
    wv, wk, wq, wm = (params[n].astype(cd) for n in ("wv", "wk", "wq", "wm"))
    bv, bk, bq, bm = (params[n].astype(jnp.float32) for n in ("bv", "bk", "bq", "bm"))

    kernel = partial(_cross_attention_kernel, num_heads=num_heads)

    def full2d(arr):
        return pl.BlockSpec(arr.shape, lambda i: (0, 0))

    in_specs = [
        pl.BlockSpec((bb, Lkv, clip_size), lambda i: (i, 0, 0)),   # v
        pl.BlockSpec((bb, Lkv, clip_size), lambda i: (i, 0, 0)),   # k
        pl.BlockSpec((bb, Lq, llama_size), lambda i: (i, 0, 0)),   # q
        pl.BlockSpec((bb, 1, 1, Lkv), lambda i: (i, 0, 0, 0)),     # mask
        full2d(wv), full2d(bv),
        full2d(wk), full2d(bk),
        full2d(wq), full2d(bq),
        full2d(wm), full2d(bm),
    ]
    out_specs = pl.BlockSpec((bb, Lq, llama_size), lambda i: (i, 0, 0))

    # Explicit VMEM budget: double-buffered activation/output blocks, resident
    # weights (budgeted x2), plus headroom for in-kernel f32 temporaries.
    # Capped at 64 MiB to stay within a v7x TensorCore's physical VMEM.
    def nbytes(shape, dtype):
        return math.prod(shape) * jnp.dtype(dtype).itemsize

    act = 2 * (2 * nbytes((bb, Lkv, clip_size), jnp.float32)
               + nbytes((bb, Lq, llama_size), jnp.float32)
               + nbytes((bb, 1, 1, Lkv), jnp.int32)
               + nbytes((bb, Lq, llama_size), jnp.float32))
    wgt = 2 * sum(nbytes(x.shape, x.dtype)
                  for x in (wv, wk, wq, wm, bv, bk, bq, bm))
    tmp = (4 * bb * max(Lq, Lkv) * mid_size * 4
           + 2 * bb * Lq * llama_size * 4)
    vmem_limit = int(max(32 * 2**20, min(1.5 * (act + wgt + tmp), 64 * 2**20)))

    return pl.pallas_call(
        kernel,
        out_shape=jax.ShapeDtypeStruct((B, Lq, llama_size), jnp.float32),
        grid_spec=pltpu.PrefetchScalarGridSpec(
            num_scalar_prefetch=0,
            grid=grid,
            in_specs=in_specs,
            out_specs=out_specs,
        ),
        compiler_params=pltpu.CompilerParams(
            dimension_semantics=("parallel",),
            vmem_limit_bytes=vmem_limit,
        ),
    )(v, k, q, mask, wv, bv, wk, bk, wq, bq, wm, bm)


def _reference(v, k, q, mask, params, num_heads):
    """Pure-JAX f32 reference mirroring the PyTorch forward (eval mode)."""
    B, Lq, _ = q.shape
    mid = params["wv"].shape[1]
    d = mid // num_heads

    def split_heads(x):  # (B, L, mid) -> (B, H, L, d)
        Bx, L, _ = x.shape
        return x.reshape(Bx, L, num_heads, d).transpose(0, 2, 1, 3)

    vp = split_heads(v @ params["wv"] + params["bv"][0])
    kp = split_heads(k @ params["wk"] + params["bk"][0])
    qp = split_heads(q @ params["wq"] + params["bq"][0])

    scores = jnp.einsum("bhqd,bhkd->bhqk", qp, kp) / math.sqrt(d)
    scores = jnp.where(mask != 0, -1000000000.0, scores)
    att = jax.nn.softmax(scores, axis=-1)
    out = jnp.einsum("bhqk,bhkd->bhqd", att, vp)
    out = out.transpose(0, 2, 1, 3).reshape(B, Lq, mid)
    return out @ params["wm"] + params["bm"][0]


if __name__ == "__main__":
    # Small shapes, chosen so llama_size is lane-dense (128) and
    # head_dim = mid_size / num_heads = 128 (lane-aligned head slices).
    B = 2
    Lq = 8           # query (llama) sequence length
    Lkv = 16         # key/value (clip) sequence length
    clip_size = 128
    llama_size = 128
    mid_size = 512
    num_heads = 4

    key = jax.random.PRNGKey(0)
    keys = jax.random.split(key, 12)

    v = jax.random.normal(keys[0], (B, Lkv, clip_size), jnp.float32)
    k = jax.random.normal(keys[1], (B, Lkv, clip_size), jnp.float32)
    q = jax.random.normal(keys[2], (B, Lq, llama_size), jnp.float32)
    # mask: (B, 1, 1, Lkv); mask out the last few key positions of batch 1.
    mask = jnp.zeros((B, 1, 1, Lkv), jnp.int32)
    mask = mask.at[1, 0, 0, -4:].set(1)

    def init_w(kk, shape):
        return 0.02 * jax.random.normal(kk, shape, jnp.float32)

    params = {
        "wv": init_w(keys[3], (clip_size, mid_size)),
        "bv": init_w(keys[4], (1, mid_size)),
        "wk": init_w(keys[5], (clip_size, mid_size)),
        "bk": init_w(keys[6], (1, mid_size)),
        "wq": init_w(keys[7], (llama_size, mid_size)),
        "bq": init_w(keys[8], (1, mid_size)),
        "wm": init_w(keys[9], (mid_size, llama_size)),
        "bm": init_w(keys[10], (1, llama_size)),
    }

    out = cross_attention(v, k, q, mask, params, num_heads=num_heads)
    out = jax.block_until_ready(out)

    ref = _reference(v, k, q, mask, params, num_heads)
    assert out.shape == (B, Lq, llama_size)
    max_err = float(jnp.max(jnp.abs(out - ref)))
    # bf16 matmuls + approx reciprocal vs f32 reference -> loose-but-meaningful tol.
    assert jnp.allclose(out, ref, atol=2e-2, rtol=2e-2), (
        f"mismatch vs reference (max abs err {max_err})")

    print("KERNEL_OK")
</pallas_src>

<mosaic_0001>
module attributes {stable_mosaic.version = 11 : i64} {
  func.func @_cross_attention_kernel(%arg0: i32, %arg1: memref<1x16x128xf32, #tpu.memory_space<vmem>>, %arg2: memref<1x16x128xf32, #tpu.memory_space<vmem>>, %arg3: memref<1x8x128xf32, #tpu.memory_space<vmem>>, %arg4: memref<1x1x1x16xi32, #tpu.memory_space<vmem>>, %arg5: memref<128x512xbf16, #tpu.memory_space<vmem>>, %arg6: memref<1x512xf32, #tpu.memory_space<vmem>>, %arg7: memref<128x512xbf16, #tpu.memory_space<vmem>>, %arg8: memref<1x512xf32, #tpu.memory_space<vmem>>, %arg9: memref<128x512xbf16, #tpu.memory_space<vmem>>, %arg10: memref<1x512xf32, #tpu.memory_space<vmem>>, %arg11: memref<512x128xbf16, #tpu.memory_space<vmem>>, %arg12: memref<1x128xf32, #tpu.memory_space<vmem>>, %arg13: memref<1x8x128xf32, #tpu.memory_space<vmem>>) attributes {dimension_semantics = [#tpu.dimension_semantics<parallel>], iteration_bounds = array<i64: 2>, scalar_prefetch = 0 : i64, scratch_operands = 0 : i64, tpu.core_type = #tpu.core_type<tc>, window_params = [{transform_indices = @transform_0, window_bounds = array<i64: 1, 16, 128>}, {transform_indices = @transform_1, window_bounds = array<i64: 1, 16, 128>}, {transform_indices = @transform_2, window_bounds = array<i64: 1, 8, 128>}, {transform_indices = @transform_3, window_bounds = array<i64: 1, 1, 1, 16>}, {pipeline_mode = #tpu.pipeline_mode<synchronous>, transform_indices = @transform_4, window_bounds = array<i64: 128, 512>}, {pipeline_mode = #tpu.pipeline_mode<synchronous>, transform_indices = @transform_5, window_bounds = array<i64: 1, 512>}, {pipeline_mode = #tpu.pipeline_mode<synchronous>, transform_indices = @transform_6, window_bounds = array<i64: 128, 512>}, {pipeline_mode = #tpu.pipeline_mode<synchronous>, transform_indices = @transform_7, window_bounds = array<i64: 1, 512>}, {pipeline_mode = #tpu.pipeline_mode<synchronous>, transform_indices = @transform_8, window_bounds = array<i64: 128, 512>}, {pipeline_mode = #tpu.pipeline_mode<synchronous>, transform_indices = @transform_9, window_bounds = array<i64: 1, 512>}, {pipeline_mode = #tpu.pipeline_mode<synchronous>, transform_indices = @transform_10, window_bounds = array<i64: 512, 128>}, {pipeline_mode = #tpu.pipeline_mode<synchronous>, transform_indices = @transform_11, window_bounds = array<i64: 1, 128>}, {transform_indices = @transform_12, window_bounds = array<i64: 1, 8, 128>}]} {
    %c0 = arith.constant 0 : index
    %c0_0 = arith.constant 0 : index
    %c0_1 = arith.constant 0 : index
    %0 = vector.load %arg1[%c0, %c0_0, %c0_1] : memref<1x16x128xf32, #tpu.memory_space<vmem>>, vector<1x16x128xf32>
    %1 = vector.shape_cast %0 : vector<1x16x128xf32> to vector<16x128xf32>
    %2 = arith.truncf %1 : vector<16x128xf32> to vector<16x128xbf16>
    %c0_2 = arith.constant 0 : index
    %c0_3 = arith.constant 0 : index
    %c0_4 = arith.constant 0 : index
    %3 = vector.load %arg2[%c0_2, %c0_3, %c0_4] : memref<1x16x128xf32, #tpu.memory_space<vmem>>, vector<1x16x128xf32>
    %4 = vector.shape_cast %3 : vector<1x16x128xf32> to vector<16x128xf32>
    %5 = arith.truncf %4 : vector<16x128xf32> to vector<16x128xbf16>
    %c0_5 = arith.constant 0 : index
    %c0_6 = arith.constant 0 : index
    %c0_7 = arith.constant 0 : index
    %6 = vector.load %arg3[%c0_5, %c0_6, %c0_7] : memref<1x8x128xf32, #tpu.memory_space<vmem>>, vector<1x8x128xf32>
    %7 = vector.shape_cast %6 : vector<1x8x128xf32> to vector<8x128xf32>
    %8 = arith.truncf %7 : vector<8x128xf32> to vector<8x128xbf16>
    %c0_8 = arith.constant 0 : index
    %c0_9 = arith.constant 0 : index
    %9 = vector.load %arg5[%c0_8, %c0_9] : memref<128x512xbf16, #tpu.memory_space<vmem>>, vector<128x512xbf16>
    %cst = arith.constant dense<0.000000e+00> : vector<16x512xf32>
    %10 = tpu.matmul %2, %9, %cst {dimension_numbers = #tpu.dot_dimension_numbers<[1], [0], [0], [1], [0, 0, 1, 1], [], []>} : vector<16x128xbf16>, vector<128x512xbf16>, vector<16x512xf32> -> vector<16x512xf32>
    %c0_10 = arith.constant 0 : index
    %c0_11 = arith.constant 0 : index
    %11 = vector.load %arg6[%c0_10, %c0_11] : memref<1x512xf32, #tpu.memory_space<vmem>>, vector<1x512xf32>
    %12 = vector.broadcast %11 : vector<1x512xf32> to vector<16x512xf32>
    %13 = arith.addf %10, %12 : vector<16x512xf32>
    %c0_12 = arith.constant 0 : index
    %c0_13 = arith.constant 0 : index
    %14 = vector.load %arg7[%c0_12, %c0_13] : memref<128x512xbf16, #tpu.memory_space<vmem>>, vector<128x512xbf16>
    %cst_14 = arith.constant dense<0.000000e+00> : vector<16x512xf32>
    %15 = tpu.matmul %5, %14, %cst_14 {dimension_numbers = #tpu.dot_dimension_numbers<[1], [0], [0], [1], [0, 0, 1, 1], [], []>} : vector<16x128xbf16>, vector<128x512xbf16>, vector<16x512xf32> -> vector<16x512xf32>
    %c0_15 = arith.constant 0 : index
    %c0_16 = arith.constant 0 : index
    %16 = vector.load %arg8[%c0_15, %c0_16] : memref<1x512xf32, #tpu.memory_space<vmem>>, vector<1x512xf32>
    %17 = vector.broadcast %16 : vector<1x512xf32> to vector<16x512xf32>
    %18 = arith.addf %15, %17 : vector<16x512xf32>
    %c0_17 = arith.constant 0 : index
    %c0_18 = arith.constant 0 : index
    %19 = vector.load %arg9[%c0_17, %c0_18] : memref<128x512xbf16, #tpu.memory_space<vmem>>, vector<128x512xbf16>
    %cst_19 = arith.constant dense<0.000000e+00> : vector<8x512xf32>
    %20 = tpu.matmul %8, %19, %cst_19 {dimension_numbers = #tpu.dot_dimension_numbers<[1], [0], [0], [1], [0, 0, 1, 1], [], []>} : vector<8x128xbf16>, vector<128x512xbf16>, vector<8x512xf32> -> vector<8x512xf32>
    %c0_20 = arith.constant 0 : index
    %c0_21 = arith.constant 0 : index
    %21 = vector.load %arg10[%c0_20, %c0_21] : memref<1x512xf32, #tpu.memory_space<vmem>>, vector<1x512xf32>
    %22 = vector.broadcast %21 : vector<1x512xf32> to vector<8x512xf32>
    %23 = arith.addf %20, %22 : vector<8x512xf32>
    %cst_22 = arith.constant 0.0883883461 : f32
    %24 = vector.broadcast %cst_22 : f32 to vector<8x512xf32>
    %25 = arith.mulf %23, %24 : vector<8x512xf32>
    %26 = arith.truncf %13 : vector<16x512xf32> to vector<16x512xbf16>
    %27 = arith.truncf %18 : vector<16x512xf32> to vector<16x512xbf16>
    %28 = arith.truncf %25 : vector<8x512xf32> to vector<8x512xbf16>
    %c0_23 = arith.constant 0 : index
    %c0_24 = arith.constant 0 : index
    %c0_25 = arith.constant 0 : index
    %c0_26 = arith.constant 0 : index
    %29 = vector.load %arg4[%c0_23, %c0_24, %c0_25, %c0_26] : memref<1x1x1x16xi32, #tpu.memory_space<vmem>>, vector<1x1x1x16xi32>
    %c0_i32 = arith.constant 0 : i32
    %30 = vector.broadcast %c0_i32 : i32 to vector<1x1x1x16xi32>
    %31 = arith.cmpi ne, %29, %30 : vector<1x1x1x16xi32>
    %32 = vector.shape_cast %31 : vector<1x1x1x16xi1> to vector<1x1x16xi1>
    %cst_27 = arith.constant 0.000000e+00 : f32
    %33 = vector.broadcast %cst_27 : f32 to vector<8x128xf32>
    %34 = vector.extract_strided_slice %28 {offsets = [0, 0], sizes = [8, 128], strides = [1, 1]} : vector<8x512xbf16> to vector<8x128xbf16>
    %35 = vector.shape_cast %34 : vector<8x128xbf16> to vector<1x8x128xbf16>
    %36 = vector.extract_strided_slice %27 {offsets = [0, 0], sizes = [16, 128], strides = [1, 1]} : vector<16x512xbf16> to vector<16x128xbf16>
    %37 = vector.shape_cast %36 : vector<16x128xbf16> to vector<1x16x128xbf16>
    %38 = vector.extract_strided_slice %26 {offsets = [0, 0], sizes = [16, 128], strides = [1, 1]} : vector<16x512xbf16> to vector<16x128xbf16>
    %39 = vector.shape_cast %38 : vector<16x128xbf16> to vector<1x16x128xbf16>
    "tpu.trace_start"() <{level = 10 : i32, message = "bqd,bkd->bqk"}> : () -> ()
    %cst_28 = arith.constant dense<0.000000e+00> : vector<1x8x16xf32>
    %40 = tpu.matmul %35, %37, %cst_28 {dimension_numbers = #tpu.dot_dimension_numbers<[2], [2], [1], [1], [0, 0, 0, 1, 1, 1], [0], [0]>} : vector<1x8x128xbf16>, vector<1x16x128xbf16>, vector<1x8x16xf32> -> vector<1x8x16xf32>
    %cst_29 = arith.constant -1.000000e+09 : f32
    "tpu.trace_stop"() : () -> ()
    %41 = vector.shape_cast %32 : vector<1x1x16xi1> to vector<1x1x16xi1>
    %42 = vector.broadcast %41 : vector<1x1x16xi1> to vector<1x8x16xi1>
    %43 = vector.broadcast %cst_29 : f32 to vector<1x8x16xf32>
    %44 = arith.select %42, %43, %40 : vector<1x8x16xi1>, vector<1x8x16xf32>
    %cst_30 = arith.constant dense<0xFF800000> : vector<1x8xf32>
    %45 = vector.multi_reduction <maximumf>, %44, %cst_30 [2] : vector<1x8x16xf32> to vector<1x8xf32>
    %46 = vector.shape_cast %45 : vector<1x8xf32> to vector<1x8x1xf32>
    %47 = vector.broadcast %46 : vector<1x8x1xf32> to vector<1x8x16xf32>
    %48 = arith.subf %44, %47 : vector<1x8x16xf32>
    %49 = math.exp %48 : vector<1x8x16xf32>
    %cst_31 = arith.constant dense<0.000000e+00> : vector<1x8xf32>
    %50 = vector.multi_reduction <add>, %49, %cst_31 [2] : vector<1x8x16xf32> to vector<1x8xf32>
    %51 = vector.shape_cast %50 : vector<1x8xf32> to vector<1x8x1xf32>
    %52 = tpu.reciprocal %51 {approx = true} : vector<1x8x1xf32> -> vector<1x8x1xf32>
    %53 = vector.broadcast %52 : vector<1x8x1xf32> to vector<1x8x16xf32>
    %54 = arith.mulf %49, %53 : vector<1x8x16xf32>
    %55 = arith.truncf %54 : vector<1x8x16xf32> to vector<1x8x16xbf16>
    "tpu.trace_start"() <{level = 10 : i32, message = "bqk,bkd->bqd"}> : () -> ()
    %cst_32 = arith.constant dense<0.000000e+00> : vector<1x8x128xf32>
    %56 = tpu.matmul %55, %39, %cst_32 {dimension_numbers = #tpu.dot_dimension_numbers<[2], [1], [1], [2], [0, 0, 0, 1, 1, 2], [0], [0]>} : vector<1x8x16xbf16>, vector<1x16x128xbf16>, vector<1x8x128xf32> -> vector<1x8x128xf32>
    "tpu.trace_stop"() : () -> ()
    %57 = vector.shape_cast %56 : vector<1x8x128xf32> to vector<8x128xf32>
    %58 = arith.truncf %57 : vector<8x128xf32> to vector<8x128xbf16>
    %c0_33 = arith.constant 0 : index
    %c0_34 = arith.constant 0 : index
    %59 = vector.load %arg11[%c0_33, %c0_34] : memref<512x128xbf16, #tpu.memory_space<vmem>>, vector<128x128xbf16>
    %cst_35 = arith.constant dense<0.000000e+00> : vector<8x128xf32>
    %60 = tpu.matmul %58, %59, %cst_35 {dimension_numbers = #tpu.dot_dimension_numbers<[1], [0], [0], [1], [0, 0, 1, 1], [], []>} : vector<8x128xbf16>, vector<128x128xbf16>, vector<8x128xf32> -> vector<8x128xf32>
    %61 = arith.addf %33, %60 : vector<8x128xf32>
    %62 = vector.extract_strided_slice %28 {offsets = [0, 128], sizes = [8, 128], strides = [1, 1]} : vector<8x512xbf16> to vector<8x128xbf16>
    %63 = vector.shape_cast %62 : vector<8x128xbf16> to vector<1x8x128xbf16>
    %64 = vector.extract_strided_slice %27 {offsets = [0, 128], sizes = [16, 128], strides = [1, 1]} : vector<16x512xbf16> to vector<16x128xbf16>
    %65 = vector.shape_cast %64 : vector<16x128xbf16> to vector<1x16x128xbf16>
    %66 = vector.extract_strided_slice %26 {offsets = [0, 128], sizes = [16, 128], strides = [1, 1]} : vector<16x512xbf16> to vector<16x128xbf16>
    %67 = vector.shape_cast %66 : vector<16x128xbf16> to vector<1x16x128xbf16>
    "tpu.trace_start"() <{level = 10 : i32, message = "bqd,bkd->bqk"}> : () -> ()
    %cst_36 = arith.constant dense<0.000000e+00> : vector<1x8x16xf32>
    %68 = tpu.matmul %63, %65, %cst_36 {dimension_numbers = #tpu.dot_dimension_numbers<[2], [2], [1], [1], [0, 0, 0, 1, 1, 1], [0], [0]>} : vector<1x8x128xbf16>, vector<1x16x128xbf16>, vector<1x8x16xf32> -> vector<1x8x16xf32>
    %cst_37 = arith.constant -1.000000e+09 : f32
    "tpu.trace_stop"() : () -> ()
    %69 = vector.shape_cast %32 : vector<1x1x16xi1> to vector<1x1x16xi1>
    %70 = vector.broadcast %69 : vector<1x1x16xi1> to vector<1x8x16xi1>
    %71 = vector.broadcast %cst_37 : f32 to vector<1x8x16xf32>
    %72 = arith.select %70, %71, %68 : vector<1x8x16xi1>, vector<1x8x16xf32>
    %cst_38 = arith.constant dense<0xFF800000> : vector<1x8xf32>
    %73 = vector.multi_reduction <maximumf>, %72, %cst_38 [2] : vector<1x8x16xf32> to vector<1x8xf32>
    %74 = vector.shape_cast %73 : vector<1x8xf32> to vector<1x8x1xf32>
    %75 = vector.broadcast %74 : vector<1x8x1xf32> to vector<1x8x16xf32>
    %76 = arith.subf %72, %75 : vector<1x8x16xf32>
    %77 = math.exp %76 : vector<1x8x16xf32>
    %cst_39 = arith.constant dense<0.000000e+00> : vector<1x8xf32>
    %78 = vector.multi_reduction <add>, %77, %cst_39 [2] : vector<1x8x16xf32> to vector<1x8xf32>
    %79 = vector.shape_cast %78 : vector<1x8xf32> to vector<1x8x1xf32>
    %80 = tpu.reciprocal %79 {approx = true} : vector<1x8x1xf32> -> vector<1x8x1xf32>
    %81 = vector.broadcast %80 : vector<1x8x1xf32> to vector<1x8x16xf32>
    %82 = arith.mulf %77, %81 : vector<1x8x16xf32>
    %83 = arith.truncf %82 : vector<1x8x16xf32> to vector<1x8x16xbf16>
    "tpu.trace_start"() <{level = 10 : i32, message = "bqk,bkd->bqd"}> : () -> ()
    %cst_40 = arith.constant dense<0.000000e+00> : vector<1x8x128xf32>
    %84 = tpu.matmul %83, %67, %cst_40 {dimension_numbers = #tpu.dot_dimension_numbers<[2], [1], [1], [2], [0, 0, 0, 1, 1, 2], [0], [0]>} : vector<1x8x16xbf16>, vector<1x16x128xbf16>, vector<1x8x128xf32> -> vector<1x8x128xf32>
    "tpu.trace_stop"() : () -> ()
    %85 = vector.shape_cast %84 : vector<1x8x128xf32> to vector<8x128xf32>
    %86 = arith.truncf %85 : vector<8x128xf32> to vector<8x128xbf16>
    %c128 = arith.constant 128 : index
    %c0_41 = arith.constant 0 : index
    %87 = vector.load %arg11[%c128, %c0_41] : memref<512x128xbf16, #tpu.memory_space<vmem>>, vector<128x128xbf16>
    %cst_42 = arith.constant dense<0.000000e+00> : vector<8x128xf32>
    %88 = tpu.matmul %86, %87, %cst_42 {dimension_numbers = #tpu.dot_dimension_numbers<[1], [0], [0], [1], [0, 0, 1, 1], [], []>} : vector<8x128xbf16>, vector<128x128xbf16>, vector<8x128xf32> -> vector<8x128xf32>
    %89 = arith.addf %61, %88 : vector<8x128xf32>
    %90 = vector.extract_strided_slice %28 {offsets = [0, 256], sizes = [8, 128], strides = [1, 1]} : vector<8x512xbf16> to vector<8x128xbf16>
    %91 = vector.shape_cast %90 : vector<8x128xbf16> to vector<1x8x128xbf16>
    %92 = vector.extract_strided_slice %27 {offsets = [0, 256], sizes = [16, 128], strides = [1, 1]} : vector<16x512xbf16> to vector<16x128xbf16>
    %93 = vector.shape_cast %92 : vector<16x128xbf16> to vector<1x16x128xbf16>
    %94 = vector.extract_strided_slice %26 {offsets = [0, 256], sizes = [16, 128], strides = [1, 1]} : vector<16x512xbf16> to vector<16x128xbf16>
    %95 = vector.shape_cast %94 : vector<16x128xbf16> to vector<1x16x128xbf16>
    "tpu.trace_start"() <{level = 10 : i32, message = "bqd,bkd->bqk"}> : () -> ()
    %cst_43 = arith.constant dense<0.000000e+00> : vector<1x8x16xf32>
    %96 = tpu.matmul %91, %93, %cst_43 {dimension_numbers = #tpu.dot_dimension_numbers<[2], [2], [1], [1], [0, 0, 0, 1, 1, 1], [0], [0]>} : vector<1x8x128xbf16>, vector<1x16x128xbf16>, vector<1x8x16xf32> -> vector<1x8x16xf32>
    %cst_44 = arith.constant -1.000000e+09 : f32
    "tpu.trace_stop"() : () -> ()
    %97 = vector.shape_cast %32 : vector<1x1x16xi1> to vector<1x1x16xi1>
    %98 = vector.broadcast %97 : vector<1x1x16xi1> to vector<1x8x16xi1>
    %99 = vector.broadcast %cst_44 : f32 to vector<1x8x16xf32>
    %100 = arith.select %98, %99, %96 : vector<1x8x16xi1>, vector<1x8x16xf32>
    %cst_45 = arith.constant dense<0xFF800000> : vector<1x8xf32>
    %101 = vector.multi_reduction <maximumf>, %100, %cst_45 [2] : vector<1x8x16xf32> to vector<1x8xf32>
    %102 = vector.shape_cast %101 : vector<1x8xf32> to vector<1x8x1xf32>
    %103 = vector.broadcast %102 : vector<1x8x1xf32> to vector<1x8x16xf32>
    %104 = arith.subf %100, %103 : vector<1x8x16xf32>
    %105 = math.exp %104 : vector<1x8x16xf32>
    %cst_46 = arith.constant dense<0.000000e+00> : vector<1x8xf32>
    %106 = vector.multi_reduction <add>, %105, %cst_46 [2] : vector<1x8x16xf32> to vector<1x8xf32>
    %107 = vector.shape_cast %106 : vector<1x8xf32> to vector<1x8x1xf32>
    %108 = tpu.reciprocal %107 {approx = true} : vector<1x8x1xf32> -> vector<1x8x1xf32>
    %109 = vector.broadcast %108 : vector<1x8x1xf32> to vector<1x8x16xf32>
    %110 = arith.mulf %105, %109 : vector<1x8x16xf32>
    %111 = arith.truncf %110 : vector<1x8x16xf32> to vector<1x8x16xbf16>
    "tpu.trace_start"() <{level = 10 : i32, message = "bqk,bkd->bqd"}> : () -> ()
    %cst_47 = arith.constant dense<0.000000e+00> : vector<1x8x128xf32>
    %112 = tpu.matmul %111, %95, %cst_47 {dimension_numbers = #tpu.dot_dimension_numbers<[2], [1], [1], [2], [0, 0, 0, 1, 1, 2], [0], [0]>} : vector<1x8x16xbf16>, vector<1x16x128xbf16>, vector<1x8x128xf32> -> vector<1x8x128xf32>
    "tpu.trace_stop"() : () -> ()
    %113 = vector.shape_cast %112 : vector<1x8x128xf32> to vector<8x128xf32>
    %114 = arith.truncf %113 : vector<8x128xf32> to vector<8x128xbf16>
    %c256 = arith.constant 256 : index
    %c0_48 = arith.constant 0 : index
    %115 = vector.load %arg11[%c256, %c0_48] : memref<512x128xbf16, #tpu.memory_space<vmem>>, vector<128x128xbf16>
    %cst_49 = arith.constant dense<0.000000e+00> : vector<8x128xf32>
    %116 = tpu.matmul %114, %115, %cst_49 {dimension_numbers = #tpu.dot_dimension_numbers<[1], [0], [0], [1], [0, 0, 1, 1], [], []>} : vector<8x128xbf16>, vector<128x128xbf16>, vector<8x128xf32> -> vector<8x128xf32>
    %117 = arith.addf %89, %116 : vector<8x128xf32>
    %118 = vector.extract_strided_slice %28 {offsets = [0, 384], sizes = [8, 128], strides = [1, 1]} : vector<8x512xbf16> to vector<8x128xbf16>
    %119 = vector.shape_cast %118 : vector<8x128xbf16> to vector<1x8x128xbf16>
    %120 = vector.extract_strided_slice %27 {offsets = [0, 384], sizes = [16, 128], strides = [1, 1]} : vector<16x512xbf16> to vector<16x128xbf16>
    %121 = vector.shape_cast %120 : vector<16x128xbf16> to vector<1x16x128xbf16>
    %122 = vector.extract_strided_slice %26 {offsets = [0, 384], sizes = [16, 128], strides = [1, 1]} : vector<16x512xbf16> to vector<16x128xbf16>
    %123 = vector.shape_cast %122 : vector<16x128xbf16> to vector<1x16x128xbf16>
    "tpu.trace_start"() <{level = 10 : i32, message = "bqd,bkd->bqk"}> : () -> ()
    %cst_50 = arith.constant dense<0.000000e+00> : vector<1x8x16xf32>
    %124 = tpu.matmul %119, %121, %cst_50 {dimension_numbers = #tpu.dot_dimension_numbers<[2], [2], [1], [1], [0, 0, 0, 1, 1, 1], [0], [0]>} : vector<1x8x128xbf16>, vector<1x16x128xbf16>, vector<1x8x16xf32> -> vector<1x8x16xf32>
    %cst_51 = arith.constant -1.000000e+09 : f32
    "tpu.trace_stop"() : () -> ()
    %125 = vector.shape_cast %32 : vector<1x1x16xi1> to vector<1x1x16xi1>
    %126 = vector.broadcast %125 : vector<1x1x16xi1> to vector<1x8x16xi1>
    %127 = vector.broadcast %cst_51 : f32 to vector<1x8x16xf32>
    %128 = arith.select %126, %127, %124 : vector<1x8x16xi1>, vector<1x8x16xf32>
    %cst_52 = arith.constant dense<0xFF800000> : vector<1x8xf32>
    %129 = vector.multi_reduction <maximumf>, %128, %cst_52 [2] : vector<1x8x16xf32> to vector<1x8xf32>
    %130 = vector.shape_cast %129 : vector<1x8xf32> to vector<1x8x1xf32>
    %131 = vector.broadcast %130 : vector<1x8x1xf32> to vector<1x8x16xf32>
    %132 = arith.subf %128, %131 : vector<1x8x16xf32>
    %133 = math.exp %132 : vector<1x8x16xf32>
    %cst_53 = arith.constant dense<0.000000e+00> : vector<1x8xf32>
    %134 = vector.multi_reduction <add>, %133, %cst_53 [2] : vector<1x8x16xf32> to vector<1x8xf32>
    %135 = vector.shape_cast %134 : vector<1x8xf32> to vector<1x8x1xf32>
    %136 = tpu.reciprocal %135 {approx = true} : vector<1x8x1xf32> -> vector<1x8x1xf32>
    %137 = vector.broadcast %136 : vector<1x8x1xf32> to vector<1x8x16xf32>
    %138 = arith.mulf %133, %137 : vector<1x8x16xf32>
    %139 = arith.truncf %138 : vector<1x8x16xf32> to vector<1x8x16xbf16>
    "tpu.trace_start"() <{level = 10 : i32, message = "bqk,bkd->bqd"}> : () -> ()
    %cst_54 = arith.constant dense<0.000000e+00> : vector<1x8x128xf32>
    %140 = tpu.matmul %139, %123, %cst_54 {dimension_numbers = #tpu.dot_dimension_numbers<[2], [1], [1], [2], [0, 0, 0, 1, 1, 2], [0], [0]>} : vector<1x8x16xbf16>, vector<1x16x128xbf16>, vector<1x8x128xf32> -> vector<1x8x128xf32>
    "tpu.trace_stop"() : () -> ()
    %141 = vector.shape_cast %140 : vector<1x8x128xf32> to vector<8x128xf32>
    %142 = arith.truncf %141 : vector<8x128xf32> to vector<8x128xbf16>
    %c384 = arith.constant 384 : index
    %c0_55 = arith.constant 0 : index
    %143 = vector.load %arg11[%c384, %c0_55] : memref<512x128xbf16, #tpu.memory_space<vmem>>, vector<128x128xbf16>
    %cst_56 = arith.constant dense<0.000000e+00> : vector<8x128xf32>
    %144 = tpu.matmul %142, %143, %cst_56 {dimension_numbers = #tpu.dot_dimension_numbers<[1], [0], [0], [1], [0, 0, 1, 1], [], []>} : vector<8x128xbf16>, vector<128x128xbf16>, vector<8x128xf32> -> vector<8x128xf32>
    %145 = arith.addf %117, %144 : vector<8x128xf32>
    %c0_57 = arith.constant 0 : index
    %c0_58 = arith.constant 0 : index
    %146 = vector.load %arg12[%c0_57, %c0_58] : memref<1x128xf32, #tpu.memory_space<vmem>>, vector<1x128xf32>
    %147 = vector.broadcast %146 : vector<1x128xf32> to vector<8x128xf32>
    %148 = arith.addf %145, %147 : vector<8x128xf32>
    %149 = vector.shape_cast %148 : vector<8x128xf32> to vector<1x8x128xf32>
    %c0_59 = arith.constant 0 : index
    %c0_60 = arith.constant 0 : index
    %c0_61 = arith.constant 0 : index
    %150 = vector.load %arg13[%c0_59, %c0_60, %c0_61] : memref<1x8x128xf32, #tpu.memory_space<vmem>>, vector<1x8x128xf32>
    tpu.vector_store %arg13[%c0_59, %c0_60, %c0_61], %149 {strides = array<i32>} : memref<1x8x128xf32, #tpu.memory_space<vmem>>, vector<1x8x128xf32>,
    return
  }
  func.func @transform_0(%arg0: i32) -> (i32, i32, i32) {
    %c0_i32 = arith.constant 0 : i32
    %c0_i32_0 = arith.constant 0 : i32
    %c0_i32_1 = arith.constant 0 : i32
    return %arg0, %c0_i32, %c0_i32_0 : i32, i32, i32
  }
  func.func @transform_1(%arg0: i32) -> (i32, i32, i32) {
    %c0_i32 = arith.constant 0 : i32
    %c0_i32_0 = arith.constant 0 : i32
    %c0_i32_1 = arith.constant 0 : i32
    return %arg0, %c0_i32, %c0_i32_0 : i32, i32, i32
  }
  func.func @transform_2(%arg0: i32) -> (i32, i32, i32) {
    %c0_i32 = arith.constant 0 : i32
    %c0_i32_0 = arith.constant 0 : i32
    %c0_i32_1 = arith.constant 0 : i32
    return %arg0, %c0_i32, %c0_i32_0 : i32, i32, i32
  }
  func.func @transform_3(%arg0: i32) -> (i32, i32, i32, i32) {
    %c0_i32 = arith.constant 0 : i32
    %c0_i32_0 = arith.constant 0 : i32
    %c0_i32_1 = arith.constant 0 : i32
    %c0_i32_2 = arith.constant 0 : i32
    return %arg0, %c0_i32, %c0_i32_0, %c0_i32_1 : i32, i32, i32, i32
  }
  func.func @transform_4(%arg0: i32) -> (i32, i32) {
    %c0_i32 = arith.constant 0 : i32
    %c0_i32_0 = arith.constant 0 : i32
    %c0_i32_1 = arith.constant 0 : i32
    return %c0_i32, %c0_i32_0 : i32, i32
  }
  func.func @transform_5(%arg0: i32) -> (i32, i32) {
    %c0_i32 = arith.constant 0 : i32
    %c0_i32_0 = arith.constant 0 : i32
    %c0_i32_1 = arith.constant 0 : i32
    return %c0_i32, %c0_i32_0 : i32, i32
  }
  func.func @transform_6(%arg0: i32) -> (i32, i32) {
    %c0_i32 = arith.constant 0 : i32
    %c0_i32_0 = arith.constant 0 : i32
    %c0_i32_1 = arith.constant 0 : i32
    return %c0_i32, %c0_i32_0 : i32, i32
  }
  func.func @transform_7(%arg0: i32) -> (i32, i32) {
    %c0_i32 = arith.constant 0 : i32
    %c0_i32_0 = arith.constant 0 : i32
    %c0_i32_1 = arith.constant 0 : i32
    return %c0_i32, %c0_i32_0 : i32, i32
  }
  func.func @transform_8(%arg0: i32) -> (i32, i32) {
    %c0_i32 = arith.constant 0 : i32
    %c0_i32_0 = arith.constant 0 : i32
    %c0_i32_1 = arith.constant 0 : i32
    return %c0_i32, %c0_i32_0 : i32, i32
  }
  func.func @transform_9(%arg0: i32) -> (i32, i32) {
    %c0_i32 = arith.constant 0 : i32
    %c0_i32_0 = arith.constant 0 : i32
    %c0_i32_1 = arith.constant 0 : i32
    return %c0_i32, %c0_i32_0 : i32, i32
  }
  func.func @transform_10(%arg0: i32) -> (i32, i32) {
    %c0_i32 = arith.constant 0 : i32
    %c0_i32_0 = arith.constant 0 : i32
    %c0_i32_1 = arith.constant 0 : i32
    return %c0_i32, %c0_i32_0 : i32, i32
  }
  func.func @transform_11(%arg0: i32) -> (i32, i32) {
    %c0_i32 = arith.constant 0 : i32
    %c0_i32_0 = arith.constant 0 : i32
    %c0_i32_1 = arith.constant 0 : i32
    return %c0_i32, %c0_i32_0 : i32, i32
  }
  func.func @transform_12(%arg0: i32) -> (i32, i32, i32) {
    %c0_i32 = arith.constant 0 : i32
    %c0_i32_0 = arith.constant 0 : i32
    %c0_i32_1 = arith.constant 0 : i32
    return %arg0, %c0_i32, %c0_i32_0 : i32, i32, i32
  }
}

</mosaic_0001>

<llo_original>
// kernel: tpu_custom_call.1
$region0: #{tpu_custom_call.1}
  #allocation0 [shape = 'u32[]', space=smem, size = 0x4, offset = 0x4, fixed_abs, tag = 'smem constant byte address 0x4 - core index']
  #allocation1 [shape = 'u32[144,128]{1,0:T(1,128)}', space=vmem, size = 0x12000, scoped, tag = 'internal scratch']
  %s0 = inlined_call_operand.hbm [shape: f32[2,16,128], index: 0, kind: input, shape index: {}]
  %s1 = inlined_call_operand.hbm [shape: f32[2,16,128], index: 1, kind: input, shape index: {}]
  %s2 = inlined_call_operand.hbm [shape: f32[2,8,128], index: 2, kind: input, shape index: {}]
  %s3 = inlined_call_operand.vmem [shape: s32[2,1,1,16], index: 3, kind: input, shape index: {}]
  %s4 = inlined_call_operand.hbm [shape: bf16[128,512], index: 4, kind: input, shape index: {}]
  %s5 = inlined_call_operand.vmem [shape: f32[1,512], index: 5, kind: input, shape index: {}]
  %s6 = inlined_call_operand.hbm [shape: bf16[128,512], index: 6, kind: input, shape index: {}]
  %s7 = inlined_call_operand.vmem [shape: f32[1,512], index: 7, kind: input, shape index: {}]
  %s8 = inlined_call_operand.hbm [shape: bf16[128,512], index: 8, kind: input, shape index: {}]
  %s9 = inlined_call_operand.vmem [shape: f32[1,512], index: 9, kind: input, shape index: {}]
  %s10 = inlined_call_operand.hbm [shape: bf16[512,128], index: 10, kind: input, shape index: {}]
  %s11 = inlined_call_operand.vmem [shape: f32[1,128], index: 11, kind: input, shape index: {}]
  %s12 = inlined_call_operand.hbm [shape: f32[2,8,128], index: 12, kind: output, shape index: {}]
  %s13 = sld [smem:[#allocation0]]
  $region109: #{tpu_custom_call.1} parent=0
    _
  %s15 = ssub.s32 1, %s13
  %s16 = scalar_select 0, %s15, %s13
  $region1: #{tpu_custom_call.1} parent=0
    #allocation2 [shape = 'u8[16384]{0}', space=vmem, size = 0x4000, scoped, tag = 'input window, operand 0']
    #allocation3 [shape = 's32[2]{0}', space=sflag, size = 0x8, scoped, tag = 'scoped memory for tpu_custom_call.1']
    #allocation4 [shape = 's32[2]{0}', space=sflag, size = 0x8, scoped, tag = 'scoped memory for tpu_custom_call.1']
    #allocation5 [shape = 'u8[16384]{0}', space=vmem, size = 0x4000, scoped, tag = 'input window, operand 1']
    #allocation6 [shape = 's32[2]{0}', space=sflag, size = 0x8, scoped, tag = 'scoped memory for tpu_custom_call.1']
    #allocation7 [shape = 'u8[8192]{0}', space=vmem, size = 0x2000, scoped, tag = 'input window, operand 2']
    #allocation8 [shape = 'u8[131072]{0}', space=vmem, size = 0x20000, scoped, tag = 'input window, operand 4, single buffered']
    #allocation9 [shape = 's32[1]{0}', space=sflag, size = 0x4, scoped, tag = 'scoped memory for tpu_custom_call.1']
    #allocation10 [shape = 'u8[131072]{0}', space=vmem, size = 0x20000, scoped, tag = 'input window, operand 6, single buffered']
    #allocation11 [shape = 'u8[131072]{0}', space=vmem, size = 0x20000, scoped, tag = 'input window, operand 8, single buffered']
    #allocation12 [shape = 's32[1]{0}', space=sflag, size = 0x4, scoped, tag = 'scoped memory for tpu_custom_call.1']
    #allocation13 [shape = 'u8[131072]{0}', space=vmem, size = 0x20000, scoped, tag = 'input window, operand 10, single buffered']
    #allocation14 [shape = 'u8[8192]{0}', space=vmem, size = 0x2000, scoped, tag = 'output window, operand 0']
    %17 = vsyncpa [#allocation3], 0
    %s18 = scalar_lea.sflag [#allocation3], 1
    %19 = vsyncpa %s18, 0
    %20 = vsyncpa [#allocation6], 0
    %s21 = scalar_lea.sflag [#allocation6], 1
    %22 = vsyncpa %s21, 0
    %23 = vsyncpa [#allocation9], 0
    %24 = vsyncpa [#allocation12], 0
    %25 = vsyncpa [#allocation4], 0
    %s26 = scalar_lea.sflag [#allocation4], 1
    %27 = vsyncpa %s26, 0
    loop: start=0, step=1, limit=4
    $region2: #{tpu_custom_call.1} parent=1 // loop_pre_header
      _
    $region3: #{tpu_custom_call.1} parent=1 // loop_header
      %s29 = sphi 0, %s33
      %p30 = scmp.ge.s32.totalorder %s29, 4
      %s39 = sphi 0, %s41
      %s42 = sphi 0, %s39
      %s43 = sphi 0, %s42
      %s59 = sphi 0, %s43
      %s65 = sphi 0, %s67
      %s68 = sphi 0, %s65
      %s69 = sphi 0, %s68
      %s85 = sphi 0, %s69
      %s91 = sphi 0, %s93
      %s94 = sphi 0, %s91
      %s95 = sphi 0, %s94
      %s111 = sphi 0, %s95
      %s117 = sphi 0, %s119
      %s120 = sphi 0, %s117
      %s121 = sphi 0, %s120
      %s137 = sphi 0, %s121
      %s141 = sphi 0, %s141
      %s143 = sphi 0, %s141
      %s144 = sphi 0, %s143
      %s158 = sphi 0, %s144
      %s162 = sphi 0, %s162
      %s164 = sphi 0, %s162
      %s165 = sphi 0, %s164
      %s179 = sphi 0, %s165
      %s183 = sphi 0, %s183
      %s185 = sphi 0, %s183
      %s186 = sphi 0, %s185
      %s200 = sphi 0, %s186
      %s204 = sphi 0, %s204
      %s206 = sphi 0, %s204
      %s207 = sphi 0, %s206
      %s221 = sphi 0, %s207
      %s225 = sphi 0, %s225
      %s227 = sphi 0, %s225
      %s228 = sphi 0, %s227
      %s242 = sphi 0, %s228
      %s246 = sphi 0, %s246
      %s248 = sphi 0, %s246
      %s249 = sphi 0, %s248
      %s263 = sphi 0, %s249
      %s267 = sphi 0, %s267
      %s269 = sphi 0, %s267
      %s270 = sphi 0, %s269
      %s284 = sphi 0, %s270
      %s288 = sphi 0, %s288
      %s290 = sphi 0, %s288
      %s291 = sphi 0, %s290
      %s305 = sphi 0, %s291
      %s311 = sphi 0, %s313
      %s314 = sphi 0, %s311
      %s315 = sphi 0, %s314
      %s331 = sphi 0, %s315
    $region4: #{tpu_custom_call.1} parent=1 // loop_header_branch
      %32 = sbr.rel (%p30) target = $region8
    $region5: #{tpu_custom_call.1} parent=1 // loop_body
      %s34 = ssub.s32 %s29, 1
      %s35 = ssub.s32 %s29, 2
      %s36 = sadd.s32 %s29, 1
      %s37 = ssub.s32 %s29, %s36
      %p38 = scmp.eq.s32.totalorder %s37, 0
      %s40 = sadd.s32 %s39, 1
      %s41 = scalar_select %p38, %s39, %s40
      %p44 = pneg %p38
      %p45 = scmp.eq.s32.totalorder %s29, 1
      %p46 = por %p44, %p45
      %p47 = scmp.ne.s32.totalorder %s39, %s42
      %p48 = scmp.eq.s32.totalorder %s29, 0
      %p49 = por %p47, %p48
      %p50 = scmp.ne.s32.totalorder %s39, %s42
      %p51 = scmp.eq.s32.totalorder %s34, 1
      %p52 = por %p50, %p51
      %p53 = scmp.ne.s32.totalorder %s42, %s43
      %p54 = scmp.eq.s32.totalorder %s34, 0
      %p55 = por %p53, %p54
      %p56 = scmp.ne.s32.totalorder %s42, %s43
      %p57 = scmp.eq.s32.totalorder %s35, 1
      %p58 = por %p56, %p57
      %p60 = scmp.ne.s32.totalorder %s43, %s59
      %p61 = scmp.eq.s32.totalorder %s35, 0
      %p62 = por %p60, %p61
      %s63 = ssub.s32 %s29, %s36
      %p64 = scmp.eq.s32.totalorder %s63, 0
      %s66 = sadd.s32 %s65, 1
      %s67 = scalar_select %p64, %s65, %s66
      %p70 = pneg %p64
      %p71 = scmp.eq.s32.totalorder %s29, 1
      %p72 = por %p70, %p71
      %p73 = scmp.ne.s32.totalorder %s65, %s68
      %p74 = scmp.eq.s32.totalorder %s29, 0
      %p75 = por %p73, %p74
      %p76 = scmp.ne.s32.totalorder %s65, %s68
      %p77 = scmp.eq.s32.totalorder %s34, 1
      %p78 = por %p76, %p77
      %p79 = scmp.ne.s32.totalorder %s68, %s69
      %p80 = scmp.eq.s32.totalorder %s34, 0
      %p81 = por %p79, %p80
      %p82 = scmp.ne.s32.totalorder %s68, %s69
      %p83 = scmp.eq.s32.totalorder %s35, 1
      %p84 = por %p82, %p83
      %p86 = scmp.ne.s32.totalorder %s69, %s85
      %p87 = scmp.eq.s32.totalorder %s35, 0
      %p88 = por %p86, %p87
      %s89 = ssub.s32 %s29, %s36
      %p90 = scmp.eq.s32.totalorder %s89, 0
      %s92 = sadd.s32 %s91, 1
      %s93 = scalar_select %p90, %s91, %s92
      %p96 = pneg %p90
      %p97 = scmp.eq.s32.totalorder %s29, 1
      %p98 = por %p96, %p97
      %p99 = scmp.ne.s32.totalorder %s91, %s94
      %p100 = scmp.eq.s32.totalorder %s29, 0
      %p101 = por %p99, %p100
      %p102 = scmp.ne.s32.totalorder %s91, %s94
      %p103 = scmp.eq.s32.totalorder %s34, 1
      %p104 = por %p102, %p103
      %p105 = scmp.ne.s32.totalorder %s94, %s95
      %p106 = scmp.eq.s32.totalorder %s34, 0
      %p107 = por %p105, %p106
      %p108 = scmp.ne.s32.totalorder %s94, %s95
      %p109 = scmp.eq.s32.totalorder %s35, 1
      %p110 = por %p108, %p109
      %p112 = scmp.ne.s32.totalorder %s95, %s111
      %p113 = scmp.eq.s32.totalorder %s35, 0
      %p114 = por %p112, %p113
      %s115 = ssub.s32 %s29, %s36
      %p116 = scmp.eq.s32.totalorder %s115, 0
      %s118 = sadd.s32 %s117, 1
      %s119 = scalar_select %p116, %s117, %s118
      %p122 = pneg %p116
      %p123 = scmp.eq.s32.totalorder %s29, 1
      %p124 = por %p122, %p123
      %p125 = scmp.ne.s32.totalorder %s117, %s120
      %p126 = scmp.eq.s32.totalorder %s29, 0
      %p127 = por %p125, %p126
      %p128 = scmp.ne.s32.totalorder %s117, %s120
      %p129 = scmp.eq.s32.totalorder %s34, 1
      %p130 = por %p128, %p129
      %p131 = scmp.ne.s32.totalorder %s120, %s121
      %p132 = scmp.eq.s32.totalorder %s34, 0
      %p133 = por %p131, %p132
      %p134 = scmp.ne.s32.totalorder %s120, %s121
      %p135 = scmp.eq.s32.totalorder %s35, 1
      %p136 = por %p134, %p135
      %p138 = scmp.ne.s32.totalorder %s121, %s137
      %p139 = scmp.eq.s32.totalorder %s35, 0
      %p140 = por %p138, %p139
      %s142 = sadd.s32 %s141, 1
      %p145 = scmp.eq.s32.totalorder %s29, 1
      %p146 = scmp.ne.s32.totalorder %s141, %s143
      %p147 = scmp.eq.s32.totalorder %s29, 0
      %p148 = por %p146, %p147
      %p149 = scmp.ne.s32.totalorder %s141, %s143
      %p150 = scmp.eq.s32.totalorder %s34, 1
      %p151 = por %p149, %p150
      %p152 = scmp.ne.s32.totalorder %s143, %s144
      %p153 = scmp.eq.s32.totalorder %s34, 0
      %p154 = por %p152, %p153
      %p155 = scmp.ne.s32.totalorder %s143, %s144
      %p156 = scmp.eq.s32.totalorder %s35, 1
      %p157 = por %p155, %p156
      %p159 = scmp.ne.s32.totalorder %s144, %s158
      %p160 = scmp.eq.s32.totalorder %s35, 0
      %p161 = por %p159, %p160
      %s163 = sadd.s32 %s162, 1
      %p166 = scmp.eq.s32.totalorder %s29, 1
      %p167 = scmp.ne.s32.totalorder %s162, %s164
      %p168 = scmp.eq.s32.totalorder %s29, 0
      %p169 = por %p167, %p168
      %p170 = scmp.ne.s32.totalorder %s162, %s164
      %p171 = scmp.eq.s32.totalorder %s34, 1
      %p172 = por %p170, %p171
      %p173 = scmp.ne.s32.totalorder %s164, %s165
      %p174 = scmp.eq.s32.totalorder %s34, 0
      %p175 = por %p173, %p174
      %p176 = scmp.ne.s32.totalorder %s164, %s165
      %p177 = scmp.eq.s32.totalorder %s35, 1
      %p178 = por %p176, %p177
      %p180 = scmp.ne.s32.totalorder %s165, %s179
      %p181 = scmp.eq.s32.totalorder %s35, 0
      %p182 = por %p180, %p181
      %s184 = sadd.s32 %s183, 1
      %p187 = scmp.eq.s32.totalorder %s29, 1
      %p188 = scmp.ne.s32.totalorder %s183, %s185
      %p189 = scmp.eq.s32.totalorder %s29, 0
      %p190 = por %p188, %p189
      %p191 = scmp.ne.s32.totalorder %s183, %s185
      %p192 = scmp.eq.s32.totalorder %s34, 1
      %p193 = por %p191, %p192
      %p194 = scmp.ne.s32.totalorder %s185, %s186
      %p195 = scmp.eq.s32.totalorder %s34, 0
      %p196 = por %p194, %p195
      %p197 = scmp.ne.s32.totalorder %s185, %s186
      %p198 = scmp.eq.s32.totalorder %s35, 1
      %p199 = por %p197, %p198
      %p201 = scmp.ne.s32.totalorder %s186, %s200
      %p202 = scmp.eq.s32.totalorder %s35, 0
      %p203 = por %p201, %p202
      %s205 = sadd.s32 %s204, 1
      %p208 = scmp.eq.s32.totalorder %s29, 1
      %p209 = scmp.ne.s32.totalorder %s204, %s206
      %p210 = scmp.eq.s32.totalorder %s29, 0
      %p211 = por %p209, %p210
      %p212 = scmp.ne.s32.totalorder %s204, %s206
      %p213 = scmp.eq.s32.totalorder %s34, 1
      %p214 = por %p212, %p213
      %p215 = scmp.ne.s32.totalorder %s206, %s207
      %p216 = scmp.eq.s32.totalorder %s34, 0
      %p217 = por %p215, %p216
      %p218 = scmp.ne.s32.totalorder %s206, %s207
      %p219 = scmp.eq.s32.totalorder %s35, 1
      %p220 = por %p218, %p219
      %p222 = scmp.ne.s32.totalorder %s207, %s221
      %p223 = scmp.eq.s32.totalorder %s35, 0
      %p224 = por %p222, %p223
      %s226 = sadd.s32 %s225, 1
      %p229 = scmp.eq.s32.totalorder %s29, 1
      %p230 = scmp.ne.s32.totalorder %s225, %s227
      %p231 = scmp.eq.s32.totalorder %s29, 0
      %p232 = por %p230, %p231
      %p233 = scmp.ne.s32.totalorder %s225, %s227
      %p234 = scmp.eq.s32.totalorder %s34, 1
      %p235 = por %p233, %p234
      %p236 = scmp.ne.s32.totalorder %s227, %s228
      %p237 = scmp.eq.s32.totalorder %s34, 0
      %p238 = por %p236, %p237
      %p239 = scmp.ne.s32.totalorder %s227, %s228
      %p240 = scmp.eq.s32.totalorder %s35, 1
      %p241 = por %p239, %p240
      %p243 = scmp.ne.s32.totalorder %s228, %s242
      %p244 = scmp.eq.s32.totalorder %s35, 0
      %p245 = por %p243, %p244
      %s247 = sadd.s32 %s246, 1
      %p250 = scmp.eq.s32.totalorder %s29, 1
      %p251 = scmp.ne.s32.totalorder %s246, %s248
      %p252 = scmp.eq.s32.totalorder %s29, 0
      %p253 = por %p251, %p252
      %p254 = scmp.ne.s32.totalorder %s246, %s248
      %p255 = scmp.eq.s32.totalorder %s34, 1
      %p256 = por %p254, %p255
      %p257 = scmp.ne.s32.totalorder %s248, %s249
      %p258 = scmp.eq.s32.totalorder %s34, 0
      %p259 = por %p257, %p258
      %p260 = scmp.ne.s32.totalorder %s248, %s249
      %p261 = scmp.eq.s32.totalorder %s35, 1
      %p262 = por %p260, %p261
      %p264 = scmp.ne.s32.totalorder %s249, %s263
      %p265 = scmp.eq.s32.totalorder %s35, 0
      %p266 = por %p264, %p265
      %s268 = sadd.s32 %s267, 1
      %p271 = scmp.eq.s32.totalorder %s29, 1
      %p272 = scmp.ne.s32.totalorder %s267, %s269
      %p273 = scmp.eq.s32.totalorder %s29, 0
      %p274 = por %p272, %p273
      %p275 = scmp.ne.s32.totalorder %s267, %s269
      %p276 = scmp.eq.s32.totalorder %s34, 1
      %p277 = por %p275, %p276
      %p278 = scmp.ne.s32.totalorder %s269, %s270
      %p279 = scmp.eq.s32.totalorder %s34, 0
      %p280 = por %p278, %p279
      %p281 = scmp.ne.s32.totalorder %s269, %s270
      %p282 = scmp.eq.s32.totalorder %s35, 1
      %p283 = por %p281, %p282
      %p285 = scmp.ne.s32.totalorder %s270, %s284
      %p286 = scmp.eq.s32.totalorder %s35, 0
      %p287 = por %p285, %p286
      %s289 = sadd.s32 %s288, 1
      %p292 = scmp.eq.s32.totalorder %s29, 1
      %p293 = scmp.ne.s32.totalorder %s288, %s290
      %p294 = scmp.eq.s32.totalorder %s29, 0
      %p295 = por %p293, %p294
      %p296 = scmp.ne.s32.totalorder %s288, %s290
      %p297 = scmp.eq.s32.totalorder %s34, 1
      %p298 = por %p296, %p297
      %p299 = scmp.ne.s32.totalorder %s290, %s291
      %p300 = scmp.eq.s32.totalorder %s34, 0
      %p301 = por %p299, %p300
      %p302 = scmp.ne.s32.totalorder %s290, %s291
      %p303 = scmp.eq.s32.totalorder %s35, 1
      %p304 = por %p302, %p303
      %p306 = scmp.ne.s32.totalorder %s291, %s305
      %p307 = scmp.eq.s32.totalorder %s35, 0
      %p308 = por %p306, %p307
      %s309 = ssub.s32 %s29, %s36
      %p310 = scmp.eq.s32.totalorder %s309, 0
      %s312 = sadd.s32 %s311, 1
      %s313 = scalar_select %p310, %s311, %s312
      %p316 = pneg %p310
      %p317 = scmp.eq.s32.totalorder %s29, 1
      %p318 = por %p316, %p317
      %p319 = scmp.ne.s32.totalorder %s311, %s314
      %p320 = scmp.eq.s32.totalorder %s29, 0
      %p321 = por %p319, %p320
      %p322 = scmp.ne.s32.totalorder %s311, %s314
      %p323 = scmp.eq.s32.totalorder %s34, 1
      %p324 = por %p322, %p323
      %p325 = scmp.ne.s32.totalorder %s314, %s315
      %p326 = scmp.eq.s32.totalorder %s34, 0
      %p327 = por %p325, %p326
      %p328 = scmp.ne.s32.totalorder %s314, %s315
      %p329 = scmp.eq.s32.totalorder %s35, 1
      %p330 = por %p328, %p329
      %p332 = scmp.ne.s32.totalorder %s315, %s331
      %p333 = scmp.eq.s32.totalorder %s35, 0
      %p334 = por %p332, %p333
      %p335 = scmp.le.s32.totalorder 1, %s29
      %p336 = scmp.lt.s32.totalorder %s29, 3
      %p337 = pnand %p335, %p336
      %p338 = pneg %p337
      // Predicated region
      $region9: #{tpu_custom_call.1} parent=5 // pred_check
        _
      $region10: #{tpu_custom_call.1} parent=5 // pred_check_branch
        %340 = sbr.rel (%p337) target = $region12
      $region11: #{tpu_custom_call.1} parent=5 // pred_region
        %s341 = ssub.s32 %s29, 1
        // Predicated region
        $region13: #{tpu_custom_call.1} parent=11 // pred_check
          %p342 = pneg %p154
        $region14: #{tpu_custom_call.1} parent=11 // pred_check_branch
          %344 = sbr.rel (%p342) target = $region16
        $region15: #{tpu_custom_call.1} parent=11 // pred_region
          %s346 = ssub.s32 4096, 4096
          %347 = vsyncadd [#allocation9], %s346
          %s348 = sshll.u32 [#allocation8], 4
          %s349 = int_to_ptr.vmem [resolvable:$true] %s348
          %354 = dma.hbm_to_vmem [thread:$0]  %s4, 4096, %s349, [#allocation9], 256, 256, 16
        $region16: #{tpu_custom_call.1} parent=11 // pred_fallthru
          _
        // Predicated region
        $region17: #{tpu_custom_call.1} parent=11 // pred_check
          %p355 = pneg %p175
        $region18: #{tpu_custom_call.1} parent=11 // pred_check_branch
          %357 = sbr.rel (%p355) target = $region20
        $region19: #{tpu_custom_call.1} parent=11 // pred_region
          _
        $region20: #{tpu_custom_call.1} parent=11 // pred_fallthru
          _
        // Predicated region
        $region21: #{tpu_custom_call.1} parent=11 // pred_check
          %p358 = pneg %p196
        $region22: #{tpu_custom_call.1} parent=11 // pred_check_branch
          %360 = sbr.rel (%p358) target = $region24
        $region23: #{tpu_custom_call.1} parent=11 // pred_region
          %s362 = ssub.s32 4096, 4096
          %363 = vsyncadd [#allocation9], %s362
          %s364 = sshll.u32 [#allocation10], 4
          %s365 = int_to_ptr.vmem [resolvable:$true] %s364
          %370 = dma.hbm_to_vmem [thread:$0]  %s6, 4096, %s365, [#allocation9], 256, 256, 16
        $region24: #{tpu_custom_call.1} parent=11 // pred_fallthru
          _
        // Predicated region
        $region25: #{tpu_custom_call.1} parent=11 // pred_check
          %p371 = pneg %p217
        $region26: #{tpu_custom_call.1} parent=11 // pred_check_branch
          %373 = sbr.rel (%p371) target = $region28
        $region27: #{tpu_custom_call.1} parent=11 // pred_region
          _
        $region28: #{tpu_custom_call.1} parent=11 // pred_fallthru
          _
        // Predicated region
        $region29: #{tpu_custom_call.1} parent=11 // pred_check
          %p374 = pneg %p238
        $region30: #{tpu_custom_call.1} parent=11 // pred_check_branch
          %376 = sbr.rel (%p374) target = $region32
        $region31: #{tpu_custom_call.1} parent=11 // pred_region
          %s378 = ssub.s32 4096, 4096
          %379 = vsyncadd [#allocation12], %s378
          %s380 = sshll.u32 [#allocation11], 4
          %s381 = int_to_ptr.vmem [resolvable:$true] %s380
          %386 = dma.hbm_to_vmem [thread:$0]  %s8, 4096, %s381, [#allocation12], 256, 256, 16
        $region32: #{tpu_custom_call.1} parent=11 // pred_fallthru
          _
        // Predicated region
        $region33: #{tpu_custom_call.1} parent=11 // pred_check
          %p387 = pneg %p259
        $region34: #{tpu_custom_call.1} parent=11 // pred_check_branch
          %389 = sbr.rel (%p387) target = $region36
        $region35: #{tpu_custom_call.1} parent=11 // pred_region
          _
        $region36: #{tpu_custom_call.1} parent=11 // pred_fallthru
          _
        // Predicated region
        $region37: #{tpu_custom_call.1} parent=11 // pred_check
          %p390 = pneg %p280
        $region38: #{tpu_custom_call.1} parent=11 // pred_check_branch
          %392 = sbr.rel (%p390) target = $region40
        $region39: #{tpu_custom_call.1} parent=11 // pred_region
          %s394 = ssub.s32 4096, 4096
          %395 = vsyncadd [#allocation12], %s394
          %s396 = sshll.u32 [#allocation13], 4
          %s397 = int_to_ptr.vmem [resolvable:$true] %s396
          %402 = dma.hbm_to_vmem [thread:$0]  %s10, 4096, %s397, [#allocation12], 64, 64, 4
        $region40: #{tpu_custom_call.1} parent=11 // pred_fallthru
          _
        // Predicated region
        $region41: #{tpu_custom_call.1} parent=11 // pred_check
          %p403 = pneg %p301
        $region42: #{tpu_custom_call.1} parent=11 // pred_check_branch
          %405 = sbr.rel (%p403) target = $region44
        $region43: #{tpu_custom_call.1} parent=11 // pred_region
          _
        $region44: #{tpu_custom_call.1} parent=11 // pred_fallthru
          _
      $region12: #{tpu_custom_call.1} parent=5 // pred_fallthru
        _
      %p406 = scmp.lt.s32.totalorder %s29, 2
      // Predicated region
      $region45: #{tpu_custom_call.1} parent=5 // pred_check
        %p407 = pneg %p406
      $region46: #{tpu_custom_call.1} parent=5 // pred_check_branch
        %409 = sbr.rel (%p407) target = $region48
      $region47: #{tpu_custom_call.1} parent=5 // pred_region
        // Predicated region
        $region49: #{tpu_custom_call.1} parent=47 // pred_check
          %p410 = pneg %p49
        $region50: #{tpu_custom_call.1} parent=47 // pred_check_branch
          %412 = sbr.rel (%p410) target = $region52
        $region51: #{tpu_custom_call.1} parent=47 // pred_region
          %s413 = sand.u32 %s39, 1
          %s414 = scalar_lea.sflag [#allocation3], %s413
          %s415 = sand.u32 %s39, 1
          %s416 = smul.addr %s415, 16
          %s417 = scalar_lea.vmem [#allocation2], %s416
          %s419 = ssub.s32 256, 256
          %420 = vsyncadd %s414, %s419
          %s421 = smul.addr %s29, 2
          %s422 = smul.addr %s421, 128
          %s423 = scalar_lea.hbm %s0, %s422
          %s424 = sshll.u32 %s417, 4
          %s425 = int_to_ptr.vmem [resolvable:$true] %s424
          %430 = dma.hbm_to_vmem [thread:$0]  %s423, 256, %s425, %s414, 128, 128, 8
        $region52: #{tpu_custom_call.1} parent=47 // pred_fallthru
          _
        // Predicated region
        $region53: #{tpu_custom_call.1} parent=47 // pred_check
          %p431 = pneg %p75
        $region54: #{tpu_custom_call.1} parent=47 // pred_check_branch
          %433 = sbr.rel (%p431) target = $region56
        $region55: #{tpu_custom_call.1} parent=47 // pred_region
          %s434 = sand.u32 %s29, 1
          %s435 = scalar_lea.sflag [#allocation6], %s434
          %s436 = sand.u32 %s65, 1
          %s437 = smul.addr %s436, 16
          %s438 = scalar_lea.vmem [#allocation5], %s437
          %s440 = ssub.s32 256, 256
          %441 = vsyncadd %s435, %s440
          %s442 = smul.addr %s29, 2
          %s443 = smul.addr %s442, 128
          %s444 = scalar_lea.hbm %s1, %s443
          %s445 = sshll.u32 %s438, 4
          %s446 = int_to_ptr.vmem [resolvable:$true] %s445
          %451 = dma.hbm_to_vmem [thread:$0]  %s444, 256, %s446, %s435, 128, 128, 8
        $region56: #{tpu_custom_call.1} parent=47 // pred_fallthru
          _
        // Predicated region
        $region57: #{tpu_custom_call.1} parent=47 // pred_check
          %p452 = pneg %p101
        $region58: #{tpu_custom_call.1} parent=47 // pred_check_branch
          %454 = sbr.rel (%p452) target = $region60
        $region59: #{tpu_custom_call.1} parent=47 // pred_region
          %s455 = sand.u32 %s29, 1
          %s456 = scalar_lea.sflag [#allocation6], %s455
          %s457 = sand.u32 %s91, 1
          %s458 = smul.addr %s457, 8
          %s459 = scalar_lea.vmem [#allocation7], %s458
          %s461 = ssub.s32 128, 128
          %462 = vsyncadd %s456, %s461
          %s463 = smul.addr %s29, 128
          %s464 = scalar_lea.hbm %s2, %s463
          %s466 = sshll.u32 %s459, 4
          %s467 = int_to_ptr.vmem [resolvable:$true] %s466
          %469 = dma.hbm_to_vmem [thread:$0]  %s464, 128, %s467, %s456
        $region60: #{tpu_custom_call.1} parent=47 // pred_fallthru
          _
        // Predicated region
        $region61: #{tpu_custom_call.1} parent=47 // pred_check
          %p470 = pneg %p127
        $region62: #{tpu_custom_call.1} parent=47 // pred_check_branch
          %472 = sbr.rel (%p470) target = $region64
        $region63: #{tpu_custom_call.1} parent=47 // pred_region
          %p473 = scmp.lt.s32.totalorder %s29, 1
          %s474 = scalar_select %p473, %s29, 1
          %s475 = scalar_lea.vmem %s3, %s474
        $region64: #{tpu_custom_call.1} parent=47 // pred_fallthru
          _
      $region48: #{tpu_custom_call.1} parent=5 // pred_fallthru
        _
      %p476 = scmp.le.s32.totalorder 1, %s29
      %p477 = scmp.lt.s32.totalorder %s29, 3
      %p478 = pnand %p476, %p477
      %p479 = pneg %p478
      // Predicated region
      $region65: #{tpu_custom_call.1} parent=5 // pred_check
        _
      $region66: #{tpu_custom_call.1} parent=5 // pred_check_branch
        %481 = sbr.rel (%p478) target = $region68
      $region67: #{tpu_custom_call.1} parent=5 // pred_region
        %s482 = ssub.s32 %s29, 1
        %s483 = sand.u32 %s42, 1
        %s484 = scalar_lea.sflag [#allocation3], %s483
        %s485 = sand.u32 %s42, 1
        %s486 = smul.addr %s485, 16
        %s487 = scalar_lea.vmem [#allocation2], %s486
        // Predicated region
        $region69: #{tpu_custom_call.1} parent=67 // pred_check
          %p488 = pneg %p55
        $region70: #{tpu_custom_call.1} parent=67 // pred_check_branch
          %490 = sbr.rel (%p488) target = $region72
        $region71: #{tpu_custom_call.1} parent=67 // pred_region
          %491 = dma.done %s484, 256
        $region72: #{tpu_custom_call.1} parent=67 // pred_fallthru
          _
        %s492 = sand.u32 %s34, 1
        %s493 = scalar_lea.sflag [#allocation6], %s492
        %s494 = sand.u32 %s68, 1
        %s495 = smul.addr %s494, 16
        %s496 = scalar_lea.vmem [#allocation5], %s495
        // Predicated region
        $region73: #{tpu_custom_call.1} parent=67 // pred_check
          %p497 = pneg %p81
        $region74: #{tpu_custom_call.1} parent=67 // pred_check_branch
          %499 = sbr.rel (%p497) target = $region76
        $region75: #{tpu_custom_call.1} parent=67 // pred_region
          %500 = dma.done %s493, 256
        $region76: #{tpu_custom_call.1} parent=67 // pred_fallthru
          _
        %s501 = sand.u32 %s34, 1
        %s502 = scalar_lea.sflag [#allocation6], %s501
        %s503 = sand.u32 %s94, 1
        %s504 = smul.addr %s503, 8
        %s505 = scalar_lea.vmem [#allocation7], %s504
        // Predicated region
        $region77: #{tpu_custom_call.1} parent=67 // pred_check
          %p506 = pneg %p107
        $region78: #{tpu_custom_call.1} parent=67 // pred_check_branch
          %508 = sbr.rel (%p506) target = $region80
        $region79: #{tpu_custom_call.1} parent=67 // pred_region
          %509 = dma.done %s502, 128
        $region80: #{tpu_custom_call.1} parent=67 // pred_fallthru
          _
        // Predicated region
        $region81: #{tpu_custom_call.1} parent=67 // pred_check
          %p510 = pneg %p154
        $region82: #{tpu_custom_call.1} parent=67 // pred_check_branch
          %512 = sbr.rel (%p510) target = $region84
        $region83: #{tpu_custom_call.1} parent=67 // pred_region
          %513 = dma.done [#allocation9], 4096
        $region84: #{tpu_custom_call.1} parent=67 // pred_fallthru
          _
        // Predicated region
        $region85: #{tpu_custom_call.1} parent=67 // pred_check
          %p514 = pneg %p196
        $region86: #{tpu_custom_call.1} parent=67 // pred_check_branch
          %516 = sbr.rel (%p514) target = $region88
        $region87: #{tpu_custom_call.1} parent=67 // pred_region
          %517 = dma.done [#allocation9], 4096
        $region88: #{tpu_custom_call.1} parent=67 // pred_fallthru
          _
        // Predicated region
        $region89: #{tpu_custom_call.1} parent=67 // pred_check
          %p518 = pneg %p238
        $region90: #{tpu_custom_call.1} parent=67 // pred_check_branch
          %520 = sbr.rel (%p518) target = $region92
        $region91: #{tpu_custom_call.1} parent=67 // pred_region
          %521 = dma.done [#allocation12], 4096
        $region92: #{tpu_custom_call.1} parent=67 // pred_fallthru
          _
        // Predicated region
        $region93: #{tpu_custom_call.1} parent=67 // pred_check
          %p522 = pneg %p280
        $region94: #{tpu_custom_call.1} parent=67 // pred_check_branch
          %524 = sbr.rel (%p522) target = $region96
        $region95: #{tpu_custom_call.1} parent=67 // pred_region
          %525 = dma.done [#allocation12], 4096
        $region96: #{tpu_custom_call.1} parent=67 // pred_fallthru
          _
        %s526 = sand.u32 %s42, 1
        %s527 = scalar_lea.sflag [#allocation3], %s526
        %s528 = sand.u32 %s42, 1
        %s529 = smul.addr %s528, 16
        %s530 = scalar_lea.vmem [#allocation2], %s529
        %p531 = pneg %p55
        %p532 = pneg %p52
        %s533 = sand.u32 %s34, 1
        %s534 = scalar_lea.sflag [#allocation6], %s533
        %s535 = sand.u32 %s68, 1
        %s536 = smul.addr %s535, 16
        %s537 = scalar_lea.vmem [#allocation5], %s536
        %p538 = pneg %p81
        %p539 = pneg %p78
        %s540 = sand.u32 %s34, 1
        %s541 = scalar_lea.sflag [#allocation6], %s540
        %s542 = sand.u32 %s94, 1
        %s543 = smul.addr %s542, 8
        %s544 = scalar_lea.vmem [#allocation7], %s543
        %p545 = pneg %p107
        %p546 = pneg %p104
        %p547 = scmp.lt.s32.totalorder %s34, 1
        %s548 = scalar_select %p547, %s34, 1
        %s549 = scalar_lea.vmem %s3, %s548
        %p550 = pneg %p133
        %p551 = pneg %p130
        %p552 = pneg %p154
        %p553 = pneg %p151
        %p554 = pneg %p175
        %p555 = pneg %p172
        %p556 = pneg %p196
        %p557 = pneg %p193
        %p558 = pneg %p217
        %p559 = pneg %p214
        %p560 = pneg %p238
        %p561 = pneg %p235
        %p562 = pneg %p259
        %p563 = pneg %p256
        %p564 = pneg %p280
        %p565 = pneg %p277
        %p566 = pneg %p301
        %p567 = pneg %p298
        %p568 = pneg %p327
        %p569 = pneg %p324
        %s570 = sand.u32 %s314, 1
        %s571 = scalar_lea.sflag [#allocation4], %s570
        %s572 = sand.u32 %s314, 1
        %s573 = smul.addr %s572, 8
        %s574 = scalar_lea.vmem [#allocation14], %s573
        %p575 = scmp.lt.s32.totalorder %s34, 1
        %s576 = scalar_select %p575, %s34, 1
        %s577 = scalar_lea.vmem %s3, %s576
        %v579 = vld [vmem:[%s487] sm:$0xff]
        %v580 = vld [vmem:[%s487 + $0x8] sm:$0xff]
        %v581 = vpack.c.bf16 %v580, %v579
        %v582 = vld [vmem:[%s496] sm:$0xff]
        %v583 = vld [vmem:[%s496 + $0x8] sm:$0xff]
        %v584 = vpack.c.bf16 %v583, %v582
        %v585 = vld [vmem:[%s505] sm:$0xff]
        %v586 = vpack.c.bf16 %v585, %v585
        %v587 = vld [vmem:[#allocation8] sm:$0xff]
        %v588 = vld [vmem:[#allocation8 + $0x8] sm:$0xff]
        %v589 = vld [vmem:[#allocation8 + $0x10] sm:$0xff]
        %v590 = vld [vmem:[#allocation8 + $0x18] sm:$0xff]
        %v591 = vld [vmem:[#allocation8 + $0x20] sm:$0xff]
        %v592 = vld [vmem:[#allocation8 + $0x28] sm:$0xff]
        %v593 = vld [vmem:[#allocation8 + $0x30] sm:$0xff]
        %v594 = vld [vmem:[#allocation8 + $0x38] sm:$0xff]
        %v595 = vld [vmem:[#allocation8 + $0x40] sm:$0xff]
        %v596 = vld [vmem:[#allocation8 + $0x48] sm:$0xff]
        %v597 = vld [vmem:[#allocation8 + $0x50] sm:$0xff]
        %v598 = vld [vmem:[#allocation8 + $0x58] sm:$0xff]
        %v599 = vld [vmem:[#allocation8 + $0x60] sm:$0xff]
        %v600 = vld [vmem:[#allocation8 + $0x68] sm:$0xff]
        %v601 = vld [vmem:[#allocation8 + $0x70] sm:$0xff]
        %v602 = vld [vmem:[#allocation8 + $0x78] sm:$0xff]
        %v603 = vld [vmem:[#allocation8 + $0x80] sm:$0xff]
        %v604 = vld [vmem:[#allocation8 + $0x88] sm:$0xff]
        %v605 = vld [vmem:[#allocation8 + $0x90] sm:$0xff]
        %v606 = vld [vmem:[#allocation8 + $0x98] sm:$0xff]
        %v607 = vld [vmem:[#allocation8 + $0xa0] sm:$0xff]
        %v608 = vld [vmem:[#allocation8 + $0xa8] sm:$0xff]
        %v609 = vld [vmem:[#allocation8 + $0xb0] sm:$0xff]
        %v610 = vld [vmem:[#allocation8 + $0xb8] sm:$0xff]
        %v611 = vld [vmem:[#allocation8 + $0xc0] sm:$0xff]
        %v612 = vld [vmem:[#allocation8 + $0xc8] sm:$0xff]
        %v613 = vld [vmem:[#allocation8 + $0xd0] sm:$0xff]
        %v614 = vld [vmem:[#allocation8 + $0xd8] sm:$0xff]
        %v615 = vld [vmem:[#allocation8 + $0xe0] sm:$0xff]
        %v616 = vld [vmem:[#allocation8 + $0xe8] sm:$0xff]
        %v617 = vld [vmem:[#allocation8 + $0xf0] sm:$0xff]
        %v618 = vld [vmem:[#allocation8 + $0xf8] sm:$0xff]
        %v619 = vld [vmem:[%s5] sm:$0xf]
        %v621 = vlaneseq
        %v622 = vshrl.u32 %v621, 7
        %v623 = vsub.s32 0, %v622
        %v624 = vrot.slane %v619, %v623
        %v625 = vlaneseq
        %v626 = vshrl.u32 %v625, 7
        %v627 = vsub.s32 1, %v626
        %v628 = vrot.slane %v619, %v627
        %v629 = vlaneseq
        %v630 = vshrl.u32 %v629, 7
        %v631 = vsub.s32 2, %v630
        %v632 = vrot.slane %v619, %v631
        %v633 = vlaneseq
        %v634 = vshrl.u32 %v633, 7
        %v635 = vsub.s32 3, %v634
        %v636 = vrot.slane %v619, %v635
        %v673 = vunpack.c.l.b16 %v587
        %v674 = vunpack.c.h.b16 %v587
        %v675 = vunpack.c.l.b16 %v588
        %v676 = vunpack.c.h.b16 %v588
        %v677 = vunpack.c.l.b16 %v589
        %v678 = vunpack.c.h.b16 %v589
        %v679 = vunpack.c.l.b16 %v590
        %v680 = vunpack.c.h.b16 %v590
        %v681 = vunpack.c.l.b16 %v591
        %v682 = vunpack.c.h.b16 %v591
        %v683 = vunpack.c.l.b16 %v592
        %v684 = vunpack.c.h.b16 %v592
        %v685 = vunpack.c.l.b16 %v593
        %v686 = vunpack.c.h.b16 %v593
        %v687 = vunpack.c.l.b16 %v594
        %v688 = vunpack.c.h.b16 %v594
        %v689 = vunpack.c.l.b16 %v595
        %v690 = vunpack.c.h.b16 %v595
        %v691 = vunpack.c.l.b16 %v596
        %v692 = vunpack.c.h.b16 %v596
        %v693 = vunpack.c.l.b16 %v597
        %v694 = vunpack.c.h.b16 %v597
        %v695 = vunpack.c.l.b16 %v598
        %v696 = vunpack.c.h.b16 %v598
        %v697 = vunpack.c.l.b16 %v599
        %v698 = vunpack.c.h.b16 %v599
        %v699 = vunpack.c.l.b16 %v600
        %v700 = vunpack.c.h.b16 %v600
        %v701 = vunpack.c.l.b16 %v601
        %v702 = vunpack.c.h.b16 %v601
        %v703 = vunpack.c.l.b16 %v602
        %v704 = vunpack.c.h.b16 %v602
        %v705 = vunpack.c.l.b16 %v603
        %v706 = vunpack.c.h.b16 %v603
        %v707 = vunpack.c.l.b16 %v604
        %v708 = vunpack.c.h.b16 %v604
        %v709 = vunpack.c.l.b16 %v605
        %v710 = vunpack.c.h.b16 %v605
        %v711 = vunpack.c.l.b16 %v606
        %v712 = vunpack.c.h.b16 %v606
        %v713 = vunpack.c.l.b16 %v607
        %v714 = vunpack.c.h.b16 %v607
        %v715 = vunpack.c.l.b16 %v608
        %v716 = vunpack.c.h.b16 %v608
        %v717 = vunpack.c.l.b16 %v609
        %v718 = vunpack.c.h.b16 %v609
        %v719 = vunpack.c.l.b16 %v610
        %v720 = vunpack.c.h.b16 %v610
        %v721 = vunpack.c.l.b16 %v611
        %v722 = vunpack.c.h.b16 %v611
        %v723 = vunpack.c.l.b16 %v612
        %v724 = vunpack.c.h.b16 %v612
        %v725 = vunpack.c.l.b16 %v613
        %v726 = vunpack.c.h.b16 %v613
        %v727 = vunpack.c.l.b16 %v614
        %v728 = vunpack.c.h.b16 %v614
        %v729 = vunpack.c.l.b16 %v615
        %v730 = vunpack.c.h.b16 %v615
        %v731 = vunpack.c.l.b16 %v616
        %v732 = vunpack.c.h.b16 %v616
        %v733 = vunpack.c.l.b16 %v617
        %v734 = vunpack.c.h.b16 %v617
        %v735 = vunpack.c.l.b16 %v618
        %v736 = vunpack.c.h.b16 %v618
        %v737 = vpack.c.b16 %v677, %v673
        %v738 = vpack.c.b16 %v678, %v674
        %v739 = vpack.c.b16 %v679, %v675
        %v740 = vpack.c.b16 %v680, %v676
        %v741 = vpack.c.b16 %v685, %v681
        %v742 = vpack.c.b16 %v686, %v682
        %v743 = vpack.c.b16 %v687, %v683
        %v744 = vpack.c.b16 %v688, %v684
        %v745 = vpack.c.b16 %v693, %v689
        %v746 = vpack.c.b16 %v694, %v690
        %v747 = vpack.c.b16 %v695, %v691
        %v748 = vpack.c.b16 %v696, %v692
        %v749 = vpack.c.b16 %v701, %v697
        %v750 = vpack.c.b16 %v702, %v698
        %v751 = vpack.c.b16 %v703, %v699
        %v752 = vpack.c.b16 %v704, %v700
        %v753 = vpack.c.b16 %v709, %v705
        %v754 = vpack.c.b16 %v710, %v706
        %v755 = vpack.c.b16 %v711, %v707
        %v756 = vpack.c.b16 %v712, %v708
        %v757 = vpack.c.b16 %v717, %v713
        %v758 = vpack.c.b16 %v718, %v714
        %v759 = vpack.c.b16 %v719, %v715
        %v760 = vpack.c.b16 %v720, %v716
        %v761 = vpack.c.b16 %v725, %v721
        %v762 = vpack.c.b16 %v726, %v722
        %v763 = vpack.c.b16 %v727, %v723
        %v764 = vpack.c.b16 %v728, %v724
        %v765 = vpack.c.b16 %v733, %v729
        %v766 = vpack.c.b16 %v734, %v730
        %v767 = vpack.c.b16 %v735, %v731
        %v768 = vpack.c.b16 %v736, %v732
        %801 = vmatprep.subr.bf16.mxu0 %v738
        %802 = vmatpush1.bf16.msra.mxu0 %v737
        %803 = vmatprep.subr.bf16.mxu0 %v742
        %804 = vmatpush1.bf16.msra.mxu0 %v741
        %805 = vmatprep.subr.bf16.mxu0 %v746
        %806 = vmatpush1.bf16.msra.mxu0 %v745
        %807 = vmatprep.subr.bf16.mxu0 %v750
        %808 = vmatpush1.bf16.msra.mxu0 %v749
        %809 = vmatprep.subr.bf16.mxu0 %v754
        %810 = vmatpush1.bf16.msra.mxu0 %v753
        %811 = vmatprep.subr.bf16.mxu0 %v758
        %812 = vmatpush1.bf16.msra.mxu0 %v757
        %813 = vmatprep.subr.bf16.mxu0 %v762
        %814 = vmatpush1.bf16.msra.mxu0 %v761
        %815 = vmatprep.subr.bf16.mxu0 %v766
        %816 = vmatpush1.bf16.msra.mxu0 %v765
        %817 = vmatprep.subr.bf16.mxu0 0
        %818 = vmatpush1.bf16.msra.mxu0 0
        %819 = vmatprep.subr.bf16.mxu0 0
        %820 = vmatpush1.bf16.msra.mxu0 0
        %821 = vmatprep.subr.bf16.mxu0 0
        %822 = vmatpush1.bf16.msra.mxu0 0
        %823 = vmatprep.subr.bf16.mxu0 0
        %824 = vmatpush1.bf16.msra.mxu0 0
        %825 = vmatprep.subr.bf16.mxu0 0
        %826 = vmatpush1.bf16.msra.mxu0 0
        %827 = vmatprep.subr.bf16.mxu0 0
        %828 = vmatpush1.bf16.msra.mxu0 0
        %829 = vmatprep.subr.bf16.mxu0 0
        %830 = vmatpush1.bf16.msra.mxu0 0
        %831 = vmatprep.subr.bf16.mxu0 0
        %832 = vmatpush1.bf16.msra.mxu0 0
        %833 = vmatprep.mubr.bf16.mxu0 0
        %834 = vmatmul.mubr.bf16.gmra.mrb[0].mxu0 %v581
        %v835 = vpop.f32.mrb[0].mxu0
        %v836 = vadd.f32 %v624, %v835
        %v837 = vpop.f32.mrb[0].mxu0
        %v838 = vadd.f32 %v628, %v837
        %v839 = vpop.f32.mrb[0].mxu0
        %v840 = vadd.f32 %v624, %v839
        %v841 = vpop.f32.mrb[0].mxu0
        %v842 = vadd.f32 %v628, %v841
        %843 = vdwg.mxu0
        %844 = vmatprep.subr.bf16.mxu0 %v740
        %845 = vmatpush1.bf16.msra.mxu0 %v739
        %846 = vmatprep.subr.bf16.mxu0 %v744
        %847 = vmatpush1.bf16.msra.mxu0 %v743
        %848 = vmatprep.subr.bf16.mxu0 %v748
        %849 = vmatpush1.bf16.msra.mxu0 %v747
        %850 = vmatprep.subr.bf16.mxu0 %v752
        %851 = vmatpush1.bf16.msra.mxu0 %v751
        %852 = vmatprep.subr.bf16.mxu0 %v756
        %853 = vmatpush1.bf16.msra.mxu0 %v755
        %854 = vmatprep.subr.bf16.mxu0 %v760
        %855 = vmatpush1.bf16.msra.mxu0 %v759
        %856 = vmatprep.subr.bf16.mxu0 %v764
        %857 = vmatpush1.bf16.msra.mxu0 %v763
        %858 = vmatprep.subr.bf16.mxu0 %v768
        %859 = vmatpush1.bf16.msra.mxu0 %v767
        %860 = vmatprep.subr.bf16.mxu0 0
        %861 = vmatpush1.bf16.msra.mxu0 0
        %862 = vmatprep.subr.bf16.mxu0 0
        %863 = vmatpush1.bf16.msra.mxu0 0
        %864 = vmatprep.subr.bf16.mxu0 0
        %865 = vmatpush1.bf16.msra.mxu0 0
        %866 = vmatprep.subr.bf16.mxu0 0
        %867 = vmatpush1.bf16.msra.mxu0 0
        %868 = vmatprep.subr.bf16.mxu0 0
        %869 = vmatpush1.bf16.msra.mxu0 0
        %870 = vmatprep.subr.bf16.mxu0 0
        %871 = vmatpush1.bf16.msra.mxu0 0
        %872 = vmatprep.subr.bf16.mxu0 0
        %873 = vmatpush1.bf16.msra.mxu0 0
        %874 = vmatprep.subr.bf16.mxu0 0
        %875 = vmatpush1.bf16.msra.mxu0 0
        %876 = vmatprep.mubr.bf16.mxu0 0
        %877 = vmatmul.mubr.bf16.gmra.mrb[0].mxu0 %v581
        %v878 = vpop.f32.mrb[0].mxu0
        %v879 = vadd.f32 %v632, %v878
        %v880 = vpop.f32.mrb[0].mxu0
        %v881 = vadd.f32 %v636, %v880
        %v882 = vpop.f32.mrb[0].mxu0
        %v883 = vadd.f32 %v632, %v882
        %v884 = vpop.f32.mrb[0].mxu0
        %v885 = vadd.f32 %v636, %v884
        %886 = vdwg.mxu0
        %v887 = vld [vmem:[#allocation10] sm:$0xff]
        %v888 = vld [vmem:[#allocation10 + $0x8] sm:$0xff]
        %v889 = vld [vmem:[#allocation10 + $0x10] sm:$0xff]
        %v890 = vld [vmem:[#allocation10 + $0x18] sm:$0xff]
        %v891 = vld [vmem:[#allocation10 + $0x20] sm:$0xff]
        %v892 = vld [vmem:[#allocation10 + $0x28] sm:$0xff]
        %v893 = vld [vmem:[#allocation10 + $0x30] sm:$0xff]
        %v894 = vld [vmem:[#allocation10 + $0x38] sm:$0xff]
        %v895 = vld [vmem:[#allocation10 + $0x40] sm:$0xff]
        %v896 = vld [vmem:[#allocation10 + $0x48] sm:$0xff]
        %v897 = vld [vmem:[#allocation10 + $0x50] sm:$0xff]
        %v898 = vld [vmem:[#allocation10 + $0x58] sm:$0xff]
        %v899 = vld [vmem:[#allocation10 + $0x60] sm:$0xff]
        %v900 = vld [vmem:[#allocation10 + $0x68] sm:$0xff]
        %v901 = vld [vmem:[#allocation10 + $0x70] sm:$0xff]
        %v902 = vld [vmem:[#allocation10 + $0x78] sm:$0xff]
        %v903 = vld [vmem:[#allocation10 + $0x80] sm:$0xff]
        %v904 = vld [vmem:[#allocation10 + $0x88] sm:$0xff]
        %v905 = vld [vmem:[#allocation10 + $0x90] sm:$0xff]
        %v906 = vld [vmem:[#allocation10 + $0x98] sm:$0xff]
        %v907 = vld [vmem:[#allocation10 + $0xa0] sm:$0xff]
        %v908 = vld [vmem:[#allocation10 + $0xa8] sm:$0xff]
        %v909 = vld [vmem:[#allocation10 + $0xb0] sm:$0xff]
        %v910 = vld [vmem:[#allocation10 + $0xb8] sm:$0xff]
        %v911 = vld [vmem:[#allocation10 + $0xc0] sm:$0xff]
        %v912 = vld [vmem:[#allocation10 + $0xc8] sm:$0xff]
        %v913 = vld [vmem:[#allocation10 + $0xd0] sm:$0xff]
        %v914 = vld [vmem:[#allocation10 + $0xd8] sm:$0xff]
        %v915 = vld [vmem:[#allocation10 + $0xe0] sm:$0xff]
        %v916 = vld [vmem:[#allocation10 + $0xe8] sm:$0xff]
        %v917 = vld [vmem:[#allocation10 + $0xf0] sm:$0xff]
        %v918 = vld [vmem:[#allocation10 + $0xf8] sm:$0xff]
        %v919 = vld [vmem:[%s7] sm:$0xf]
        %v921 = vlaneseq
        %v922 = vshrl.u32 %v921, 7
        %v923 = vsub.s32 0, %v922
        %v924 = vrot.slane %v919, %v923
        %v925 = vlaneseq
        %v926 = vshrl.u32 %v925, 7
        %v927 = vsub.s32 1, %v926
        %v928 = vrot.slane %v919, %v927
        %v929 = vlaneseq
        %v930 = vshrl.u32 %v929, 7
        %v931 = vsub.s32 2, %v930
        %v932 = vrot.slane %v919, %v931
        %v933 = vlaneseq
        %v934 = vshrl.u32 %v933, 7
        %v935 = vsub.s32 3, %v934
        %v936 = vrot.slane %v919, %v935
        %v973 = vunpack.c.l.b16 %v887
        %v974 = vunpack.c.h.b16 %v887
        %v975 = vunpack.c.l.b16 %v888
        %v976 = vunpack.c.h.b16 %v888
        %v977 = vunpack.c.l.b16 %v889
        %v978 = vunpack.c.h.b16 %v889
        %v979 = vunpack.c.l.b16 %v890
        %v980 = vunpack.c.h.b16 %v890
        %v981 = vunpack.c.l.b16 %v891
        %v982 = vunpack.c.h.b16 %v891
        %v983 = vunpack.c.l.b16 %v892
        %v984 = vunpack.c.h.b16 %v892
        %v985 = vunpack.c.l.b16 %v893
        %v986 = vunpack.c.h.b16 %v893
        %v987 = vunpack.c.l.b16 %v894
        %v988 = vunpack.c.h.b16 %v894
        %v989 = vunpack.c.l.b16 %v895
        %v990 = vunpack.c.h.b16 %v895
        %v991 = vunpack.c.l.b16 %v896
        %v992 = vunpack.c.h.b16 %v896
        %v993 = vunpack.c.l.b16 %v897
        %v994 = vunpack.c.h.b16 %v897
        %v995 = vunpack.c.l.b16 %v898
        %v996 = vunpack.c.h.b16 %v898
        %v997 = vunpack.c.l.b16 %v899
        %v998 = vunpack.c.h.b16 %v899
        %v999 = vunpack.c.l.b16 %v900
        %v1000 = vunpack.c.h.b16 %v900
        %v1001 = vunpack.c.l.b16 %v901
        %v1002 = vunpack.c.h.b16 %v901
        %v1003 = vunpack.c.l.b16 %v902
        %v1004 = vunpack.c.h.b16 %v902
        %v1005 = vunpack.c.l.b16 %v903
        %v1006 = vunpack.c.h.b16 %v903
        %v1007 = vunpack.c.l.b16 %v904
        %v1008 = vunpack.c.h.b16 %v904
        %v1009 = vunpack.c.l.b16 %v905
        %v1010 = vunpack.c.h.b16 %v905
        %v1011 = vunpack.c.l.b16 %v906
        %v1012 = vunpack.c.h.b16 %v906
        %v1013 = vunpack.c.l.b16 %v907
        %v1014 = vunpack.c.h.b16 %v907
        %v1015 = vunpack.c.l.b16 %v908
        %v1016 = vunpack.c.h.b16 %v908
        %v1017 = vunpack.c.l.b16 %v909
        %v1018 = vunpack.c.h.b16 %v909
        %v1019 = vunpack.c.l.b16 %v910
        %v1020 = vunpack.c.h.b16 %v910
        %v1021 = vunpack.c.l.b16 %v911
        %v1022 = vunpack.c.h.b16 %v911
        %v1023 = vunpack.c.l.b16 %v912
        %v1024 = vunpack.c.h.b16 %v912
        %v1025 = vunpack.c.l.b16 %v913
        %v1026 = vunpack.c.h.b16 %v913
        %v1027 = vunpack.c.l.b16 %v914
        %v1028 = vunpack.c.h.b16 %v914
        %v1029 = vunpack.c.l.b16 %v915
        %v1030 = vunpack.c.h.b16 %v915
        %v1031 = vunpack.c.l.b16 %v916
        %v1032 = vunpack.c.h.b16 %v916
        %v1033 = vunpack.c.l.b16 %v917
        %v1034 = vunpack.c.h.b16 %v917
        %v1035 = vunpack.c.l.b16 %v918
        %v1036 = vunpack.c.h.b16 %v918
        %v1037 = vpack.c.b16 %v977, %v973
        %v1038 = vpack.c.b16 %v978, %v974
        %v1039 = vpack.c.b16 %v979, %v975
        %v1040 = vpack.c.b16 %v980, %v976
        %v1041 = vpack.c.b16 %v985, %v981
        %v1042 = vpack.c.b16 %v986, %v982
        %v1043 = vpack.c.b16 %v987, %v983
        %v1044 = vpack.c.b16 %v988, %v984
        %v1045 = vpack.c.b16 %v993, %v989
        %v1046 = vpack.c.b16 %v994, %v990
        %v1047 = vpack.c.b16 %v995, %v991
        %v1048 = vpack.c.b16 %v996, %v992
        %v1049 = vpack.c.b16 %v1001, %v997
        %v1050 = vpack.c.b16 %v1002, %v998
        %v1051 = vpack.c.b16 %v1003, %v999
        %v1052 = vpack.c.b16 %v1004, %v1000
        %v1053 = vpack.c.b16 %v1009, %v1005
        %v1054 = vpack.c.b16 %v1010, %v1006
        %v1055 = vpack.c.b16 %v1011, %v1007
        %v1056 = vpack.c.b16 %v1012, %v1008
        %v1057 = vpack.c.b16 %v1017, %v1013
        %v1058 = vpack.c.b16 %v1018, %v1014
        %v1059 = vpack.c.b16 %v1019, %v1015
        %v1060 = vpack.c.b16 %v1020, %v1016
        %v1061 = vpack.c.b16 %v1025, %v1021
        %v1062 = vpack.c.b16 %v1026, %v1022
        %v1063 = vpack.c.b16 %v1027, %v1023
        %v1064 = vpack.c.b16 %v1028, %v1024
        %v1065 = vpack.c.b16 %v1033, %v1029
        %v1066 = vpack.c.b16 %v1034, %v1030
        %v1067 = vpack.c.b16 %v1035, %v1031
        %v1068 = vpack.c.b16 %v1036, %v1032
        %1101 = vmatprep.subr.bf16.mxu0 %v1038
        %1102 = vmatpush1.bf16.msra.mxu0 %v1037
        %1103 = vmatprep.subr.bf16.mxu0 %v1042
        %1104 = vmatpush1.bf16.msra.mxu0 %v1041
        %1105 = vmatprep.subr.bf16.mxu0 %v1046
        %1106 = vmatpush1.bf16.msra.mxu0 %v1045
        %1107 = vmatprep.subr.bf16.mxu0 %v1050
        %1108 = vmatpush1.bf16.msra.mxu0 %v1049
        %1109 = vmatprep.subr.bf16.mxu0 %v1054
        %1110 = vmatpush1.bf16.msra.mxu0 %v1053
        %1111 = vmatprep.subr.bf16.mxu0 %v1058
        %1112 = vmatpush1.bf16.msra.mxu0 %v1057
        %1113 = vmatprep.subr.bf16.mxu0 %v1062
        %1114 = vmatpush1.bf16.msra.mxu0 %v1061
        %1115 = vmatprep.subr.bf16.mxu0 %v1066
        %1116 = vmatpush1.bf16.msra.mxu0 %v1065
        %1117 = vmatprep.subr.bf16.mxu0 0
        %1118 = vmatpush1.bf16.msra.mxu0 0
        %1119 = vmatprep.subr.bf16.mxu0 0
        %1120 = vmatpush1.bf16.msra.mxu0 0
        %1121 = vmatprep.subr.bf16.mxu0 0
        %1122 = vmatpush1.bf16.msra.mxu0 0
        %1123 = vmatprep.subr.bf16.mxu0 0
        %1124 = vmatpush1.bf16.msra.mxu0 0
        %1125 = vmatprep.subr.bf16.mxu0 0
        %1126 = vmatpush1.bf16.msra.mxu0 0
        %1127 = vmatprep.subr.bf16.mxu0 0
        %1128 = vmatpush1.bf16.msra.mxu0 0
        %1129 = vmatprep.subr.bf16.mxu0 0
        %1130 = vmatpush1.bf16.msra.mxu0 0
        %1131 = vmatprep.subr.bf16.mxu0 0
        %1132 = vmatpush1.bf16.msra.mxu0 0
        %1133 = vmatprep.mubr.bf16.mxu0 0
        %1134 = vmatmul.mubr.bf16.gmra.mrb[0].mxu0 %v584
        %v1135 = vpop.f32.mrb[0].mxu0
        %v1136 = vadd.f32 %v924, %v1135
        %v1137 = vpop.f32.mrb[0].mxu0
        %v1138 = vadd.f32 %v928, %v1137
        %v1139 = vpop.f32.mrb[0].mxu0
        %v1140 = vadd.f32 %v924, %v1139
        %v1141 = vpop.f32.mrb[0].mxu0
        %v1142 = vadd.f32 %v928, %v1141
        %1143 = vdwg.mxu0
        %1144 = vmatprep.subr.bf16.mxu0 %v1040
        %1145 = vmatpush1.bf16.msra.mxu0 %v1039
        %1146 = vmatprep.subr.bf16.mxu0 %v1044
        %1147 = vmatpush1.bf16.msra.mxu0 %v1043
        %1148 = vmatprep.subr.bf16.mxu0 %v1048
        %1149 = vmatpush1.bf16.msra.mxu0 %v1047
        %1150 = vmatprep.subr.bf16.mxu0 %v1052
        %1151 = vmatpush1.bf16.msra.mxu0 %v1051
        %1152 = vmatprep.subr.bf16.mxu0 %v1056
        %1153 = vmatpush1.bf16.msra.mxu0 %v1055
        %1154 = vmatprep.subr.bf16.mxu0 %v1060
        %1155 = vmatpush1.bf16.msra.mxu0 %v1059
        %1156 = vmatprep.subr.bf16.mxu0 %v1064
        %1157 = vmatpush1.bf16.msra.mxu0 %v1063
        %1158 = vmatprep.subr.bf16.mxu0 %v1068
        %1159 = vmatpush1.bf16.msra.mxu0 %v1067
        %1160 = vmatprep.subr.bf16.mxu0 0
        %1161 = vmatpush1.bf16.msra.mxu0 0
        %1162 = vmatprep.subr.bf16.mxu0 0
        %1163 = vmatpush1.bf16.msra.mxu0 0
        %1164 = vmatprep.subr.bf16.mxu0 0
        %1165 = vmatpush1.bf16.msra.mxu0 0
        %1166 = vmatprep.subr.bf16.mxu0 0
        %1167 = vmatpush1.bf16.msra.mxu0 0
        %1168 = vmatprep.subr.bf16.mxu0 0
        %1169 = vmatpush1.bf16.msra.mxu0 0
        %1170 = vmatprep.subr.bf16.mxu0 0
        %1171 = vmatpush1.bf16.msra.mxu0 0
        %1172 = vmatprep.subr.bf16.mxu0 0
        %1173 = vmatpush1.bf16.msra.mxu0 0
        %1174 = vmatprep.subr.bf16.mxu0 0
        %1175 = vmatpush1.bf16.msra.mxu0 0
        %1176 = vmatprep.mubr.bf16.mxu0 0
        %1177 = vmatmul.mubr.bf16.gmra.mrb[0].mxu0 %v584
        %v1178 = vpop.f32.mrb[0].mxu0
        %v1179 = vadd.f32 %v932, %v1178
        %v1180 = vpop.f32.mrb[0].mxu0
        %v1181 = vadd.f32 %v936, %v1180
        %v1182 = vpop.f32.mrb[0].mxu0
        %v1183 = vadd.f32 %v932, %v1182
        %v1184 = vpop.f32.mrb[0].mxu0
        %v1185 = vadd.f32 %v936, %v1184
        %1186 = vdwg.mxu0
        %v1187 = vld [vmem:[#allocation11] sm:$0xff]
        %v1188 = vld [vmem:[#allocation11 + $0x8] sm:$0xff]
        %v1189 = vld [vmem:[#allocation11 + $0x10] sm:$0xff]
        %v1190 = vld [vmem:[#allocation11 + $0x18] sm:$0xff]
        %v1191 = vld [vmem:[#allocation11 + $0x20] sm:$0xff]
        %v1192 = vld [vmem:[#allocation11 + $0x28] sm:$0xff]
        %v1193 = vld [vmem:[#allocation11 + $0x30] sm:$0xff]
        %v1194 = vld [vmem:[#allocation11 + $0x38] sm:$0xff]
        %v1195 = vld [vmem:[#allocation11 + $0x40] sm:$0xff]
        %v1196 = vld [vmem:[#allocation11 + $0x48] sm:$0xff]
        %v1197 = vld [vmem:[#allocation11 + $0x50] sm:$0xff]
        %v1198 = vld [vmem:[#allocation11 + $0x58] sm:$0xff]
        %v1199 = vld [vmem:[#allocation11 + $0x60] sm:$0xff]
        %v1200 = vld [vmem:[#allocation11 + $0x68] sm:$0xff]
        %v1201 = vld [vmem:[#allocation11 + $0x70] sm:$0xff]
        %v1202 = vld [vmem:[#allocation11 + $0x78] sm:$0xff]
        %v1203 = vld [vmem:[#allocation11 + $0x80] sm:$0xff]
        %v1204 = vld [vmem:[#allocation11 + $0x88] sm:$0xff]
        %v1205 = vld [vmem:[#allocation11 + $0x90] sm:$0xff]
        %v1206 = vld [vmem:[#allocation11 + $0x98] sm:$0xff]
        %v1207 = vld [vmem:[#allocation11 + $0xa0] sm:$0xff]
        %v1208 = vld [vmem:[#allocation11 + $0xa8] sm:$0xff]
        %v1209 = vld [vmem:[#allocation11 + $0xb0] sm:$0xff]
        %v1210 = vld [vmem:[#allocation11 + $0xb8] sm:$0xff]
        %v1211 = vld [vmem:[#allocation11 + $0xc0] sm:$0xff]
        %v1212 = vld [vmem:[#allocation11 + $0xc8] sm:$0xff]
        %v1213 = vld [vmem:[#allocation11 + $0xd0] sm:$0xff]
        %v1214 = vld [vmem:[#allocation11 + $0xd8] sm:$0xff]
        %v1215 = vld [vmem:[#allocation11 + $0xe0] sm:$0xff]
        %v1216 = vld [vmem:[#allocation11 + $0xe8] sm:$0xff]
        %v1217 = vld [vmem:[#allocation11 + $0xf0] sm:$0xff]
        %v1218 = vld [vmem:[#allocation11 + $0xf8] sm:$0xff]
        %v1219 = vld [vmem:[%s9] sm:$0xf]
        %v1221 = vlaneseq
        %v1222 = vshrl.u32 %v1221, 7
        %v1223 = vsub.s32 0, %v1222
        %v1224 = vrot.slane %v1219, %v1223
        %v1225 = vlaneseq
        %v1226 = vshrl.u32 %v1225, 7
        %v1227 = vsub.s32 1, %v1226
        %v1228 = vrot.slane %v1219, %v1227
        %v1229 = vlaneseq
        %v1230 = vshrl.u32 %v1229, 7
        %v1231 = vsub.s32 2, %v1230
        %v1232 = vrot.slane %v1219, %v1231
        %v1233 = vlaneseq
        %v1234 = vshrl.u32 %v1233, 7
        %v1235 = vsub.s32 3, %v1234
        %v1236 = vrot.slane %v1219, %v1235
        %v1273 = vunpack.c.l.b16 %v1187
        %v1274 = vunpack.c.h.b16 %v1187
        %v1275 = vunpack.c.l.b16 %v1188
        %v1276 = vunpack.c.h.b16 %v1188
        %v1277 = vunpack.c.l.b16 %v1189
        %v1278 = vunpack.c.h.b16 %v1189
        %v1279 = vunpack.c.l.b16 %v1190
        %v1280 = vunpack.c.h.b16 %v1190
        %v1281 = vunpack.c.l.b16 %v1191
        %v1282 = vunpack.c.h.b16 %v1191
        %v1283 = vunpack.c.l.b16 %v1192
        %v1284 = vunpack.c.h.b16 %v1192
        %v1285 = vunpack.c.l.b16 %v1193
        %v1286 = vunpack.c.h.b16 %v1193
        %v1287 = vunpack.c.l.b16 %v1194
        %v1288 = vunpack.c.h.b16 %v1194
        %v1289 = vunpack.c.l.b16 %v1195
        %v1290 = vunpack.c.h.b16 %v1195
        %v1291 = vunpack.c.l.b16 %v1196
        %v1292 = vunpack.c.h.b16 %v1196
        %v1293 = vunpack.c.l.b16 %v1197
        %v1294 = vunpack.c.h.b16 %v1197
        %v1295 = vunpack.c.l.b16 %v1198
        %v1296 = vunpack.c.h.b16 %v1198
        %v1297 = vunpack.c.l.b16 %v1199
        %v1298 = vunpack.c.h.b16 %v1199
        %v1299 = vunpack.c.l.b16 %v1200
        %v1300 = vunpack.c.h.b16 %v1200
        %v1301 = vunpack.c.l.b16 %v1201
        %v1302 = vunpack.c.h.b16 %v1201
        %v1303 = vunpack.c.l.b16 %v1202
        %v1304 = vunpack.c.h.b16 %v1202
        %v1305 = vunpack.c.l.b16 %v1203
        %v1306 = vunpack.c.h.b16 %v1203
        %v1307 = vunpack.c.l.b16 %v1204
        %v1308 = vunpack.c.h.b16 %v1204
        %v1309 = vunpack.c.l.b16 %v1205
        %v1310 = vunpack.c.h.b16 %v1205
        %v1311 = vunpack.c.l.b16 %v1206
        %v1312 = vunpack.c.h.b16 %v1206
        %v1313 = vunpack.c.l.b16 %v1207
        %v1314 = vunpack.c.h.b16 %v1207
        %v1315 = vunpack.c.l.b16 %v1208
        %v1316 = vunpack.c.h.b16 %v1208
        %v1317 = vunpack.c.l.b16 %v1209
        %v1318 = vunpack.c.h.b16 %v1209
        %v1319 = vunpack.c.l.b16 %v1210
        %v1320 = vunpack.c.h.b16 %v1210
        %v1321 = vunpack.c.l.b16 %v1211
        %v1322 = vunpack.c.h.b16 %v1211
        %v1323 = vunpack.c.l.b16 %v1212
        %v1324 = vunpack.c.h.b16 %v1212
        %v1325 = vunpack.c.l.b16 %v1213
        %v1326 = vunpack.c.h.b16 %v1213
        %v1327 = vunpack.c.l.b16 %v1214
        %v1328 = vunpack.c.h.b16 %v1214
        %v1329 = vunpack.c.l.b16 %v1215
        %v1330 = vunpack.c.h.b16 %v1215
        %v1331 = vunpack.c.l.b16 %v1216
        %v1332 = vunpack.c.h.b16 %v1216
        %v1333 = vunpack.c.l.b16 %v1217
        %v1334 = vunpack.c.h.b16 %v1217
        %v1335 = vunpack.c.l.b16 %v1218
        %v1336 = vunpack.c.h.b16 %v1218
        %v1337 = vpack.c.b16 %v1277, %v1273
        %v1338 = vpack.c.b16 %v1278, %v1274
        %v1339 = vpack.c.b16 %v1279, %v1275
        %v1340 = vpack.c.b16 %v1280, %v1276
        %v1341 = vpack.c.b16 %v1285, %v1281
        %v1342 = vpack.c.b16 %v1286, %v1282
        %v1343 = vpack.c.b16 %v1287, %v1283
        %v1344 = vpack.c.b16 %v1288, %v1284
        %v1345 = vpack.c.b16 %v1293, %v1289
        %v1346 = vpack.c.b16 %v1294, %v1290
        %v1347 = vpack.c.b16 %v1295, %v1291
        %v1348 = vpack.c.b16 %v1296, %v1292
        %v1349 = vpack.c.b16 %v1301, %v1297
        %v1350 = vpack.c.b16 %v1302, %v1298
        %v1351 = vpack.c.b16 %v1303, %v1299
        %v1352 = vpack.c.b16 %v1304, %v1300
        %v1353 = vpack.c.b16 %v1309, %v1305
        %v1354 = vpack.c.b16 %v1310, %v1306
        %v1355 = vpack.c.b16 %v1311, %v1307
        %v1356 = vpack.c.b16 %v1312, %v1308
        %v1357 = vpack.c.b16 %v1317, %v1313
        %v1358 = vpack.c.b16 %v1318, %v1314
        %v1359 = vpack.c.b16 %v1319, %v1315
        %v1360 = vpack.c.b16 %v1320, %v1316
        %v1361 = vpack.c.b16 %v1325, %v1321
        %v1362 = vpack.c.b16 %v1326, %v1322
        %v1363 = vpack.c.b16 %v1327, %v1323
        %v1364 = vpack.c.b16 %v1328, %v1324
        %v1365 = vpack.c.b16 %v1333, %v1329
        %v1366 = vpack.c.b16 %v1334, %v1330
        %v1367 = vpack.c.b16 %v1335, %v1331
        %v1368 = vpack.c.b16 %v1336, %v1332
        %1401 = vmatprep.subr.bf16.mxu0 %v1338
        %1402 = vmatpush1.bf16.msra.mxu0 %v1337
        %1403 = vmatprep.subr.bf16.mxu0 %v1342
        %1404 = vmatpush1.bf16.msra.mxu0 %v1341
        %1405 = vmatprep.subr.bf16.mxu0 %v1346
        %1406 = vmatpush1.bf16.msra.mxu0 %v1345
        %1407 = vmatprep.subr.bf16.mxu0 %v1350
        %1408 = vmatpush1.bf16.msra.mxu0 %v1349
        %1409 = vmatprep.subr.bf16.mxu0 %v1354
        %1410 = vmatpush1.bf16.msra.mxu0 %v1353
        %1411 = vmatprep.subr.bf16.mxu0 %v1358
        %1412 = vmatpush1.bf16.msra.mxu0 %v1357
        %1413 = vmatprep.subr.bf16.mxu0 %v1362
        %1414 = vmatpush1.bf16.msra.mxu0 %v1361
        %1415 = vmatprep.subr.bf16.mxu0 %v1366
        %1416 = vmatpush1.bf16.msra.mxu0 %v1365
        %1417 = vmatprep.subr.bf16.mxu0 0
        %1418 = vmatpush1.bf16.msra.mxu0 0
        %1419 = vmatprep.subr.bf16.mxu0 0
        %1420 = vmatpush1.bf16.msra.mxu0 0
        %1421 = vmatprep.subr.bf16.mxu0 0
        %1422 = vmatpush1.bf16.msra.mxu0 0
        %1423 = vmatprep.subr.bf16.mxu0 0
        %1424 = vmatpush1.bf16.msra.mxu0 0
        %1425 = vmatprep.subr.bf16.mxu0 0
        %1426 = vmatpush1.bf16.msra.mxu0 0
        %1427 = vmatprep.subr.bf16.mxu0 0
        %1428 = vmatpush1.bf16.msra.mxu0 0
        %1429 = vmatprep.subr.bf16.mxu0 0
        %1430 = vmatpush1.bf16.msra.mxu0 0
        %1431 = vmatprep.subr.bf16.mxu0 0
        %1432 = vmatpush1.bf16.msra.mxu0 0
        %1433 = vmatprep.mubr.bf16.mxu0 0
        %1434 = vmatmul.mubr.bf16.gmra.mrb[0].mxu0 %v586
        %v1435 = vpop.f32.mrb[0].mxu0
        %v1436 = vadd.f32 %v1224, %v1435
        %v1437 = vpop.f32.mrb[0].mxu0
        %v1438 = vadd.f32 %v1228, %v1437
        %v1439 = vpop.f32.mrb[0].mxu0
        %v1440 = vpop.f32.mrb[0].mxu0
        %1441 = vdwg.mxu0
        %1442 = vmatprep.subr.bf16.mxu0 %v1340
        %1443 = vmatpush1.bf16.msra.mxu0 %v1339
        %1444 = vmatprep.subr.bf16.mxu0 %v1344
        %1445 = vmatpush1.bf16.msra.mxu0 %v1343
        %1446 = vmatprep.subr.bf16.mxu0 %v1348
        %1447 = vmatpush1.bf16.msra.mxu0 %v1347
        %1448 = vmatprep.subr.bf16.mxu0 %v1352
        %1449 = vmatpush1.bf16.msra.mxu0 %v1351
        %1450 = vmatprep.subr.bf16.mxu0 %v1356
        %1451 = vmatpush1.bf16.msra.mxu0 %v1355
        %1452 = vmatprep.subr.bf16.mxu0 %v1360
        %1453 = vmatpush1.bf16.msra.mxu0 %v1359
        %1454 = vmatprep.subr.bf16.mxu0 %v1364
        %1455 = vmatpush1.bf16.msra.mxu0 %v1363
        %1456 = vmatprep.subr.bf16.mxu0 %v1368
        %1457 = vmatpush1.bf16.msra.mxu0 %v1367
        %1458 = vmatprep.subr.bf16.mxu0 0
        %1459 = vmatpush1.bf16.msra.mxu0 0
        %1460 = vmatprep.subr.bf16.mxu0 0
        %1461 = vmatpush1.bf16.msra.mxu0 0
        %1462 = vmatprep.subr.bf16.mxu0 0
        %1463 = vmatpush1.bf16.msra.mxu0 0
        %1464 = vmatprep.subr.bf16.mxu0 0
        %1465 = vmatpush1.bf16.msra.mxu0 0
        %1466 = vmatprep.subr.bf16.mxu0 0
        %1467 = vmatpush1.bf16.msra.mxu0 0
        %1468 = vmatprep.subr.bf16.mxu0 0
        %1469 = vmatpush1.bf16.msra.mxu0 0
        %1470 = vmatprep.subr.bf16.mxu0 0
        %1471 = vmatpush1.bf16.msra.mxu0 0
        %1472 = vmatprep.subr.bf16.mxu0 0
        %1473 = vmatpush1.bf16.msra.mxu0 0
        %1474 = vmatprep.mubr.bf16.mxu0 0
        %1475 = vmatmul.mubr.bf16.gmra.mrb[0].mxu0 %v586
        %v1476 = vpop.f32.mrb[0].mxu0
        %v1477 = vadd.f32 %v1232, %v1476
        %v1478 = vpop.f32.mrb[0].mxu0
        %v1479 = vadd.f32 %v1236, %v1478
        %v1480 = vpop.f32.mrb[0].mxu0
        %v1481 = vpop.f32.mrb[0].mxu0
        %1482 = vdwg.mxu0
        %v1483 = vmul.f32 %v1436, 0.088388346
        %v1484 = vmul.f32 %v1438, 0.088388346
        %v1485 = vmul.f32 %v1477, 0.088388346
        %v1486 = vmul.f32 %v1479, 0.088388346
        %v1487 = vpack.c.bf16 %v840, %v836
        %v1488 = vpack.c.bf16 %v842, %v838
        %v1489 = vpack.c.bf16 %v883, %v879
        %v1490 = vpack.c.bf16 %v885, %v881
        %v1491 = vpack.c.bf16 %v1140, %v1136
        %v1492 = vpack.c.bf16 %v1142, %v1138
        %v1493 = vpack.c.bf16 %v1183, %v1179
        %v1494 = vpack.c.bf16 %v1185, %v1181
        %v1495 = vpack.c.bf16 %v1483, %v1483
        %v1496 = vpack.c.bf16 %v1484, %v1484
        %v1497 = vpack.c.bf16 %v1485, %v1485
        %v1498 = vpack.c.bf16 %v1486, %v1486
        %v1499 = vld [vmem:[%s577] sm:$0x1]
        %vm1500 = vcmp.ne.s32.totalorder %v1499, 0
        %1501 = vmatprep.subr.bf16.mxu0 0
        %1502 = vmatpush1.bf16.xpose.msra.mxu0 %v1491
        %1503 = vmatprep.subr.bf16.mxu0 0
        %1504 = vmatpush1.bf16.xpose.msra.mxu0 0
        %1505 = vmatprep.subr.bf16.mxu0 0
        %1506 = vmatpush1.bf16.xpose.msra.mxu0 0
        %1507 = vmatprep.subr.bf16.mxu0 0
        %1508 = vmatpush1.bf16.xpose.msra.mxu0 0
        %1509 = vmatprep.subr.bf16.mxu0 0
        %1510 = vmatpush1.bf16.xpose.msra.mxu0 0
        %1511 = vmatprep.subr.bf16.mxu0 0
        %1512 = vmatpush1.bf16.xpose.msra.mxu0 0
        %1513 = vmatprep.subr.bf16.mxu0 0
        %1514 = vmatpush1.bf16.xpose.msra.mxu0 0
        %1515 = vmatprep.subr.bf16.mxu0 0
        %1516 = vmatpush1.bf16.xpose.msra.mxu0 0
        %1517 = vmatprep.subr.bf16.mxu0 0
        %1518 = vmatpush1.bf16.xpose.msra.mxu0 0
        %1519 = vmatprep.subr.bf16.mxu0 0
        %1520 = vmatpush1.bf16.xpose.msra.mxu0 0
        %1521 = vmatprep.subr.bf16.mxu0 0
        %1522 = vmatpush1.bf16.xpose.msra.mxu0 0
        %1523 = vmatprep.subr.bf16.mxu0 0
        %1524 = vmatpush1.bf16.xpose.msra.mxu0 0
        %1525 = vmatprep.subr.bf16.mxu0 0
        %1526 = vmatpush1.bf16.xpose.msra.mxu0 0
        %1527 = vmatprep.subr.bf16.mxu0 0
        %1528 = vmatpush1.bf16.xpose.msra.mxu0 0
        %1529 = vmatprep.subr.bf16.mxu0 0
        %1530 = vmatpush1.bf16.xpose.msra.mxu0 0
        %1531 = vmatprep.subr.bf16.mxu0 0
        %1532 = vmatpush1.bf16.xpose.msra.mxu0 0
        %1533 = vmatprep.mubr.bf16.mxu0 0
        %1534 = vmatmul.mubr.bf16.gmra.mrb[0].mxu0 %v1495
        %v1535 = vpop.f32.mrb[0].mxu0
        %v1536 = vadd.f32 0.0, %v1535
        %v1537 = vpop.f32.mrb[0].mxu0
        %v1538 = vpop.f32.mrb[0].mxu0
        %v1539 = vpop.f32.mrb[0].mxu0
        %1540 = vdwg.mxu0
        %v1541 = vsel %vm1500, 1, 0
        %v1542 = vlaneseq
        %v1543 = vshrl.u32 %v1542, 7
        %v1544 = vsub.s32 0, %v1543
        %v1545 = vrot.slane %v1541, %v1544
        %vm1546 = vcmp.eq.s32.totalorder %v1545, 1
        %v1547 = vsel %vm1546, -1e+09, %v1536
        %vm1548 = vcmask 130048
        %v1549 = vsel %vm1548, %v1547, -inf
        %1550 = vmax.xlane.f32.xlu0 %v1549
        %v1551 = vpop.xlane.xlu0 %1550
        %v1552 = vsub.f32 %v1547, %v1551
        %v1553 = vmul.f32 %v1552, 1.442695
        %v1554 = vpow.pop %v1553
        %v1555 = vsel %vm1548, %v1554, 0.0
        %1556 = vadd.xlane.f32.xlu0 %v1555
        %v1557 = vpop.xlane.xlu0 %1556
        %v1558 = vrcp.pop %v1557
        %v1559 = vmul.f32 %v1554, %v1558
        %v1560 = vpack.c.bf16 %v1559, %v1559
        %v1562 = vsel %vm1548, %v1560, 0
        %1564 = vmatprep.subr.bf16.mxu0 0
        %1565 = vmatpush1.bf16.msra.mxu0 %v1487
        %1566 = vmatprep.subr.bf16.mxu0 0
        %1567 = vmatpush1.bf16.msra.mxu0 0
        %1568 = vmatprep.subr.bf16.mxu0 0
        %1569 = vmatpush1.bf16.msra.mxu0 0
        %1570 = vmatprep.subr.bf16.mxu0 0
        %1571 = vmatpush1.bf16.msra.mxu0 0
        %1572 = vmatprep.subr.bf16.mxu0 0
        %1573 = vmatpush1.bf16.msra.mxu0 0
        %1574 = vmatprep.subr.bf16.mxu0 0
        %1575 = vmatpush1.bf16.msra.mxu0 0
        %1576 = vmatprep.subr.bf16.mxu0 0
        %1577 = vmatpush1.bf16.msra.mxu0 0
        %1578 = vmatprep.subr.bf16.mxu0 0
        %1579 = vmatpush1.bf16.msra.mxu0 0
        %1580 = vmatprep.subr.bf16.mxu0 0
        %1581 = vmatpush1.bf16.msra.mxu0 0
        %1582 = vmatprep.subr.bf16.mxu0 0
        %1583 = vmatpush1.bf16.msra.mxu0 0
        %1584 = vmatprep.subr.bf16.mxu0 0
        %1585 = vmatpush1.bf16.msra.mxu0 0
        %1586 = vmatprep.subr.bf16.mxu0 0
        %1587 = vmatpush1.bf16.msra.mxu0 0
        %1588 = vmatprep.subr.bf16.mxu0 0
        %1589 = vmatpush1.bf16.msra.mxu0 0
        %1590 = vmatprep.subr.bf16.mxu0 0
        %1591 = vmatpush1.bf16.msra.mxu0 0
        %1592 = vmatprep.subr.bf16.mxu0 0
        %1593 = vmatpush1.bf16.msra.mxu0 0
        %1594 = vmatprep.subr.bf16.mxu0 0
        %1595 = vmatpush1.bf16.msra.mxu0 0
        %1596 = vmatprep.mubr.bf16.mxu0 0
        %1597 = vmatmul.mubr.bf16.gmra.mrb[0].mxu0 %v1562
        %v1598 = vpop.f32.mrb[0].mxu0
        %v1599 = vadd.f32 0.0, %v1598
        %v1600 = vpop.f32.mrb[0].mxu0
        %v1601 = vpop.f32.mrb[0].mxu0
        %v1602 = vpop.f32.mrb[0].mxu0
        %1603 = vdwg.mxu0
        %v1604 = vpack.c.bf16 %v1599, %v1599
        %v1605 = vld [vmem:[#allocation13] sm:$0xf]
        %v1606 = vld [vmem:[#allocation13 + $0x4] sm:$0xf]
        %v1607 = vld [vmem:[#allocation13 + $0x8] sm:$0xf]
        %v1608 = vld [vmem:[#allocation13 + $0xc] sm:$0xf]
        %v1609 = vld [vmem:[#allocation13 + $0x10] sm:$0xf]
        %v1610 = vld [vmem:[#allocation13 + $0x14] sm:$0xf]
        %v1611 = vld [vmem:[#allocation13 + $0x18] sm:$0xf]
        %v1612 = vld [vmem:[#allocation13 + $0x1c] sm:$0xf]
        %v1613 = vld [vmem:[#allocation13 + $0x20] sm:$0xf]
        %v1614 = vld [vmem:[#allocation13 + $0x24] sm:$0xf]
        %v1615 = vld [vmem:[#allocation13 + $0x28] sm:$0xf]
        %v1616 = vld [vmem:[#allocation13 + $0x2c] sm:$0xf]
        %v1617 = vld [vmem:[#allocation13 + $0x30] sm:$0xf]
        %v1618 = vld [vmem:[#allocation13 + $0x34] sm:$0xf]
        %v1619 = vld [vmem:[#allocation13 + $0x38] sm:$0xf]
        %v1620 = vld [vmem:[#allocation13 + $0x3c] sm:$0xf]
        %1621 = vmatprep.subr.bf16.mxu0 0
        %1622 = vmatpush1.bf16.xpose.msra.mxu0 %v1492
        %1623 = vmatprep.subr.bf16.mxu0 0
        %1624 = vmatpush1.bf16.xpose.msra.mxu0 0
        %1625 = vmatprep.subr.bf16.mxu0 0
        %1626 = vmatpush1.bf16.xpose.msra.mxu0 0
        %1627 = vmatprep.subr.bf16.mxu0 0
        %1628 = vmatpush1.bf16.xpose.msra.mxu0 0
        %1629 = vmatprep.subr.bf16.mxu0 0
        %1630 = vmatpush1.bf16.xpose.msra.mxu0 0
        %1631 = vmatprep.subr.bf16.mxu0 0
        %1632 = vmatpush1.bf16.xpose.msra.mxu0 0
        %1633 = vmatprep.subr.bf16.mxu0 0
        %1634 = vmatpush1.bf16.xpose.msra.mxu0 0
        %1635 = vmatprep.subr.bf16.mxu0 0
        %1636 = vmatpush1.bf16.xpose.msra.mxu0 0
        %1637 = vmatprep.subr.bf16.mxu0 0
        %1638 = vmatpush1.bf16.xpose.msra.mxu0 0
        %1639 = vmatprep.subr.bf16.mxu0 0
        %1640 = vmatpush1.bf16.xpose.msra.mxu0 0
        %1641 = vmatprep.subr.bf16.mxu0 0
        %1642 = vmatpush1.bf16.xpose.msra.mxu0 0
        %1643 = vmatprep.subr.bf16.mxu0 0
        %1644 = vmatpush1.bf16.xpose.msra.mxu0 0
        %1645 = vmatprep.subr.bf16.mxu0 0
        %1646 = vmatpush1.bf16.xpose.msra.mxu0 0
        %1647 = vmatprep.subr.bf16.mxu0 0
        %1648 = vmatpush1.bf16.xpose.msra.mxu0 0
        %1649 = vmatprep.subr.bf16.mxu0 0
        %1650 = vmatpush1.bf16.xpose.msra.mxu0 0
        %1651 = vmatprep.subr.bf16.mxu0 0
        %1652 = vmatpush1.bf16.xpose.msra.mxu0 0
        %1653 = vmatprep.mubr.bf16.mxu0 0
        %1654 = vmatmul.mubr.bf16.gmra.mrb[0].mxu0 %v1496
        %v1655 = vpop.f32.mrb[0].mxu0
        %v1656 = vadd.f32 0.0, %v1655
        %v1657 = vpop.f32.mrb[0].mxu0
        %v1658 = vpop.f32.mrb[0].mxu0
        %v1659 = vpop.f32.mrb[0].mxu0
        %1660 = vdwg.mxu0
        %v1661 = vsel %vm1546, -1e+09, %v1656
        %v1662 = vsel %vm1548, %v1661, -inf
        %1663 = vmax.xlane.f32.xlu0 %v1662
        %v1664 = vpop.xlane.xlu0 %1663
        %v1665 = vsub.f32 %v1661, %v1664
        %v1666 = vmul.f32 %v1665, 1.442695
        %v1667 = vpow.pop %v1666
        %v1668 = vsel %vm1548, %v1667, 0.0
        %1669 = vadd.xlane.f32.xlu0 %v1668
        %v1670 = vpop.xlane.xlu0 %1669
        %v1671 = vrcp.pop %v1670
        %v1672 = vmul.f32 %v1667, %v1671
        %v1673 = vpack.c.bf16 %v1672, %v1672
        %v1675 = vsel %vm1548, %v1673, 0
        %1677 = vmatprep.subr.bf16.mxu0 0
        %1678 = vmatpush1.bf16.msra.mxu0 %v1488
        %1679 = vmatprep.subr.bf16.mxu0 0
        %1680 = vmatpush1.bf16.msra.mxu0 0
        %1681 = vmatprep.subr.bf16.mxu0 0
        %1682 = vmatpush1.bf16.msra.mxu0 0
        %1683 = vmatprep.subr.bf16.mxu0 0
        %1684 = vmatpush1.bf16.msra.mxu0 0
        %1685 = vmatprep.subr.bf16.mxu0 0
        %1686 = vmatpush1.bf16.msra.mxu0 0
        %1687 = vmatprep.subr.bf16.mxu0 0
        %1688 = vmatpush1.bf16.msra.mxu0 0
        %1689 = vmatprep.subr.bf16.mxu0 0
        %1690 = vmatpush1.bf16.msra.mxu0 0
        %1691 = vmatprep.subr.bf16.mxu0 0
        %1692 = vmatpush1.bf16.msra.mxu0 0
        %1693 = vmatprep.subr.bf16.mxu0 0
        %1694 = vmatpush1.bf16.msra.mxu0 0
        %1695 = vmatprep.subr.bf16.mxu0 0
        %1696 = vmatpush1.bf16.msra.mxu0 0
        %1697 = vmatprep.subr.bf16.mxu0 0
        %1698 = vmatpush1.bf16.msra.mxu0 0
        %1699 = vmatprep.subr.bf16.mxu0 0
        %1700 = vmatpush1.bf16.msra.mxu0 0
        %1701 = vmatprep.subr.bf16.mxu0 0
        %1702 = vmatpush1.bf16.msra.mxu0 0
        %1703 = vmatprep.subr.bf16.mxu0 0
        %1704 = vmatpush1.bf16.msra.mxu0 0
        %1705 = vmatprep.subr.bf16.mxu0 0
        %1706 = vmatpush1.bf16.msra.mxu0 0
        %1707 = vmatprep.subr.bf16.mxu0 0
        %1708 = vmatpush1.bf16.msra.mxu0 0
        %1709 = vmatprep.mubr.bf16.mxu0 0
        %1710 = vmatmul.mubr.bf16.gmra.mrb[0].mxu0 %v1675
        %v1711 = vpop.f32.mrb[0].mxu0
        %v1712 = vadd.f32 0.0, %v1711
        %v1713 = vpop.f32.mrb[0].mxu0
        %v1714 = vpop.f32.mrb[0].mxu0
        %v1715 = vpop.f32.mrb[0].mxu0
        %1716 = vdwg.mxu0
        %v1717 = vpack.c.bf16 %v1712, %v1712
        %v1718 = vld [vmem:[#allocation13 + $0x40] sm:$0xf]
        %v1719 = vld [vmem:[#allocation13 + $0x44] sm:$0xf]
        %v1720 = vld [vmem:[#allocation13 + $0x48] sm:$0xf]
        %v1721 = vld [vmem:[#allocation13 + $0x4c] sm:$0xf]
        %v1722 = vld [vmem:[#allocation13 + $0x50] sm:$0xf]
        %v1723 = vld [vmem:[#allocation13 + $0x54] sm:$0xf]
        %v1724 = vld [vmem:[#allocation13 + $0x58] sm:$0xf]
        %v1725 = vld [vmem:[#allocation13 + $0x5c] sm:$0xf]
        %v1726 = vld [vmem:[#allocation13 + $0x60] sm:$0xf]
        %v1727 = vld [vmem:[#allocation13 + $0x64] sm:$0xf]
        %v1728 = vld [vmem:[#allocation13 + $0x68] sm:$0xf]
        %v1729 = vld [vmem:[#allocation13 + $0x6c] sm:$0xf]
        %v1730 = vld [vmem:[#allocation13 + $0x70] sm:$0xf]
        %v1731 = vld [vmem:[#allocation13 + $0x74] sm:$0xf]
        %v1732 = vld [vmem:[#allocation13 + $0x78] sm:$0xf]
        %v1733 = vld [vmem:[#allocation13 + $0x7c] sm:$0xf]
        %v1750 = vunpack.c.l.b16 %v1718
        %v1751 = vunpack.c.l.b16 %v1719
        %v1752 = vunpack.c.l.b16 %v1720
        %v1753 = vunpack.c.l.b16 %v1721
        %v1754 = vunpack.c.l.b16 %v1722
        %v1755 = vunpack.c.l.b16 %v1723
        %v1756 = vunpack.c.l.b16 %v1724
        %v1757 = vunpack.c.l.b16 %v1725
        %v1758 = vunpack.c.l.b16 %v1726
        %v1759 = vunpack.c.l.b16 %v1727
        %v1760 = vunpack.c.l.b16 %v1728
        %v1761 = vunpack.c.l.b16 %v1729
        %v1762 = vunpack.c.l.b16 %v1730
        %v1763 = vunpack.c.l.b16 %v1731
        %v1764 = vunpack.c.l.b16 %v1732
        %v1765 = vunpack.c.l.b16 %v1733
        %v1766 = vpack.c.b16 %v1751, %v1750
        %v1767 = vpack.c.b16 %v1753, %v1752
        %v1768 = vpack.c.b16 %v1755, %v1754
        %v1769 = vpack.c.b16 %v1757, %v1756
        %v1770 = vpack.c.b16 %v1759, %v1758
        %v1771 = vpack.c.b16 %v1761, %v1760
        %v1772 = vpack.c.b16 %v1763, %v1762
        %v1773 = vpack.c.b16 %v1765, %v1764
        %1782 = vmatprep.subr.bf16.mxu0 0
        %1783 = vmatpush1.bf16.msra.mxu0 %v1766
        %1784 = vmatprep.subr.bf16.mxu0 0
        %1785 = vmatpush1.bf16.msra.mxu0 %v1767
        %1786 = vmatprep.subr.bf16.mxu0 0
        %1787 = vmatpush1.bf16.msra.mxu0 %v1768
        %1788 = vmatprep.subr.bf16.mxu0 0
        %1789 = vmatpush1.bf16.msra.mxu0 %v1769
        %1790 = vmatprep.subr.bf16.mxu0 0
        %1791 = vmatpush1.bf16.msra.mxu0 %v1770
        %1792 = vmatprep.subr.bf16.mxu0 0
        %1793 = vmatpush1.bf16.msra.mxu0 %v1771
        %1794 = vmatprep.subr.bf16.mxu0 0
        %1795 = vmatpush1.bf16.msra.mxu0 %v1772
        %1796 = vmatprep.subr.bf16.mxu0 0
        %1797 = vmatpush1.bf16.msra.mxu0 %v1773
        %1798 = vmatprep.subr.bf16.mxu0 0
        %1799 = vmatpush1.bf16.msra.mxu0 0
        %1800 = vmatprep.subr.bf16.mxu0 0
        %1801 = vmatpush1.bf16.msra.mxu0 0
        %1802 = vmatprep.subr.bf16.mxu0 0
        %1803 = vmatpush1.bf16.msra.mxu0 0
        %1804 = vmatprep.subr.bf16.mxu0 0
        %1805 = vmatpush1.bf16.msra.mxu0 0
        %1806 = vmatprep.subr.bf16.mxu0 0
        %1807 = vmatpush1.bf16.msra.mxu0 0
        %1808 = vmatprep.subr.bf16.mxu0 0
        %1809 = vmatpush1.bf16.msra.mxu0 0
        %1810 = vmatprep.subr.bf16.mxu0 0
        %1811 = vmatpush1.bf16.msra.mxu0 0
        %1812 = vmatprep.subr.bf16.mxu0 0
        %1813 = vmatpush1.bf16.msra.mxu0 0
        %1814 = vmatprep.mubr.bf16.mxu0 0
        %1815 = vmatmul.mubr.bf16.gmra.mrb[0].mxu0 %v1717
        %v1816 = vpop.f32.mrb[0].mxu0
        %v1817 = vadd.f32 0.0, %v1816
        %v1818 = vpop.f32.mrb[0].mxu0
        %v1819 = vpop.f32.mrb[0].mxu0
        %v1820 = vpop.f32.mrb[0].mxu0
        %1821 = vdwg.mxu0
        %v1838 = vunpack.c.l.b16 %v1605
        %v1839 = vunpack.c.l.b16 %v1606
        %v1840 = vunpack.c.l.b16 %v1607
        %v1841 = vunpack.c.l.b16 %v1608
        %v1842 = vunpack.c.l.b16 %v1609
        %v1843 = vunpack.c.l.b16 %v1610
        %v1844 = vunpack.c.l.b16 %v1611
        %v1845 = vunpack.c.l.b16 %v1612
        %v1846 = vunpack.c.l.b16 %v1613
        %v1847 = vunpack.c.l.b16 %v1614
        %v1848 = vunpack.c.l.b16 %v1615
        %v1849 = vunpack.c.l.b16 %v1616
        %v1850 = vunpack.c.l.b16 %v1617
        %v1851 = vunpack.c.l.b16 %v1618
        %v1852 = vunpack.c.l.b16 %v1619
        %v1853 = vunpack.c.l.b16 %v1620
        %v1854 = vpack.c.b16 %v1839, %v1838
        %v1855 = vpack.c.b16 %v1841, %v1840
        %v1856 = vpack.c.b16 %v1843, %v1842
        %v1857 = vpack.c.b16 %v1845, %v1844
        %v1858 = vpack.c.b16 %v1847, %v1846
        %v1859 = vpack.c.b16 %v1849, %v1848
        %v1860 = vpack.c.b16 %v1851, %v1850
        %v1861 = vpack.c.b16 %v1853, %v1852
        %1870 = vmatprep.subr.bf16.mxu0 0
        %1871 = vmatpush1.bf16.msra.mxu0 %v1854
        %1872 = vmatprep.subr.bf16.mxu0 0
        %1873 = vmatpush1.bf16.msra.mxu0 %v1855
        %1874 = vmatprep.subr.bf16.mxu0 0
        %1875 = vmatpush1.bf16.msra.mxu0 %v1856
        %1876 = vmatprep.subr.bf16.mxu0 0
        %1877 = vmatpush1.bf16.msra.mxu0 %v1857
        %1878 = vmatprep.subr.bf16.mxu0 0
        %1879 = vmatpush1.bf16.msra.mxu0 %v1858
        %1880 = vmatprep.subr.bf16.mxu0 0
        %1881 = vmatpush1.bf16.msra.mxu0 %v1859
        %1882 = vmatprep.subr.bf16.mxu0 0
        %1883 = vmatpush1.bf16.msra.mxu0 %v1860
        %1884 = vmatprep.subr.bf16.mxu0 0
        %1885 = vmatpush1.bf16.msra.mxu0 %v1861
        %1886 = vmatprep.subr.bf16.mxu0 0
        %1887 = vmatpush1.bf16.msra.mxu0 0
        %1888 = vmatprep.subr.bf16.mxu0 0
        %1889 = vmatpush1.bf16.msra.mxu0 0
        %1890 = vmatprep.subr.bf16.mxu0 0
        %1891 = vmatpush1.bf16.msra.mxu0 0
        %1892 = vmatprep.subr.bf16.mxu0 0
        %1893 = vmatpush1.bf16.msra.mxu0 0
        %1894 = vmatprep.subr.bf16.mxu0 0
        %1895 = vmatpush1.bf16.msra.mxu0 0
        %1896 = vmatprep.subr.bf16.mxu0 0
        %1897 = vmatpush1.bf16.msra.mxu0 0
        %1898 = vmatprep.subr.bf16.mxu0 0
        %1899 = vmatpush1.bf16.msra.mxu0 0
        %1900 = vmatprep.subr.bf16.mxu0 0
        %1901 = vmatpush1.bf16.msra.mxu0 0
        %1902 = vmatprep.mubr.bf16.mxu0 0
        %1903 = vmatmul.mubr.bf16.gmra.mrb[0].mxu0 %v1604
        %v1904 = vpop.f32.mrb[0].mxu0
        %v1905 = vadd.f32 %v1817, %v1904
        %v1906 = vpop.f32.mrb[0].mxu0
        %v1907 = vpop.f32.mrb[0].mxu0
        %v1908 = vpop.f32.mrb[0].mxu0
        %1909 = vdwg.mxu0
        %1910 = vmatprep.subr.bf16.mxu0 0
        %1911 = vmatpush1.bf16.xpose.msra.mxu0 %v1493
        %1912 = vmatprep.subr.bf16.mxu0 0
        %1913 = vmatpush1.bf16.xpose.msra.mxu0 0
        %1914 = vmatprep.subr.bf16.mxu0 0
        %1915 = vmatpush1.bf16.xpose.msra.mxu0 0
        %1916 = vmatprep.subr.bf16.mxu0 0
        %1917 = vmatpush1.bf16.xpose.msra.mxu0 0
        %1918 = vmatprep.subr.bf16.mxu0 0
        %1919 = vmatpush1.bf16.xpose.msra.mxu0 0
        %1920 = vmatprep.subr.bf16.mxu0 0
        %1921 = vmatpush1.bf16.xpose.msra.mxu0 0
        %1922 = vmatprep.subr.bf16.mxu0 0
        %1923 = vmatpush1.bf16.xpose.msra.mxu0 0
        %1924 = vmatprep.subr.bf16.mxu0 0
        %1925 = vmatpush1.bf16.xpose.msra.mxu0 0
        %1926 = vmatprep.subr.bf16.mxu0 0
        %1927 = vmatpush1.bf16.xpose.msra.mxu0 0
        %1928 = vmatprep.subr.bf16.mxu0 0
        %1929 = vmatpush1.bf16.xpose.msra.mxu0 0
        %1930 = vmatprep.subr.bf16.mxu0 0
        %1931 = vmatpush1.bf16.xpose.msra.mxu0 0
        %1932 = vmatprep.subr.bf16.mxu0 0
        %1933 = vmatpush1.bf16.xpose.msra.mxu0 0
        %1934 = vmatprep.subr.bf16.mxu0 0
        %1935 = vmatpush1.bf16.xpose.msra.mxu0 0
        %1936 = vmatprep.subr.bf16.mxu0 0
        %1937 = vmatpush1.bf16.xpose.msra.mxu0 0
        %1938 = vmatprep.subr.bf16.mxu0 0
        %1939 = vmatpush1.bf16.xpose.msra.mxu0 0
        %1940 = vmatprep.subr.bf16.mxu0 0
        %1941 = vmatpush1.bf16.xpose.msra.mxu0 0
        %1942 = vmatprep.mubr.bf16.mxu0 0
        %1943 = vmatmul.mubr.bf16.gmra.mrb[0].mxu0 %v1497
        %v1944 = vpop.f32.mrb[0].mxu0
        %v1945 = vadd.f32 0.0, %v1944
        %v1946 = vpop.f32.mrb[0].mxu0
        %v1947 = vpop.f32.mrb[0].mxu0
        %v1948 = vpop.f32.mrb[0].mxu0
        %1949 = vdwg.mxu0
        %v1950 = vsel %vm1546, -1e+09, %v1945
        %v1951 = vsel %vm1548, %v1950, -inf
        %1952 = vmax.xlane.f32.xlu0 %v1951
        %v1953 = vpop.xlane.xlu0 %1952
        %v1954 = vsub.f32 %v1950, %v1953
        %v1955 = vmul.f32 %v1954, 1.442695
        %v1956 = vpow.pop %v1955
        %v1957 = vsel %vm1548, %v1956, 0.0
        %1958 = vadd.xlane.f32.xlu0 %v1957
        %v1959 = vpop.xlane.xlu0 %1958
        %v1960 = vrcp.pop %v1959
        %v1961 = vmul.f32 %v1956, %v1960
        %v1962 = vpack.c.bf16 %v1961, %v1961
        %v1964 = vsel %vm1548, %v1962, 0
        %1966 = vmatprep.subr.bf16.mxu0 0
        %1967 = vmatpush1.bf16.msra.mxu0 %v1489
        %1968 = vmatprep.subr.bf16.mxu0 0
        %1969 = vmatpush1.bf16.msra.mxu0 0
        %1970 = vmatprep.subr.bf16.mxu0 0
        %1971 = vmatpush1.bf16.msra.mxu0 0
        %1972 = vmatprep.subr.bf16.mxu0 0
        %1973 = vmatpush1.bf16.msra.mxu0 0
        %1974 = vmatprep.subr.bf16.mxu0 0
        %1975 = vmatpush1.bf16.msra.mxu0 0
        %1976 = vmatprep.subr.bf16.mxu0 0
        %1977 = vmatpush1.bf16.msra.mxu0 0
        %1978 = vmatprep.subr.bf16.mxu0 0
        %1979 = vmatpush1.bf16.msra.mxu0 0
        %1980 = vmatprep.subr.bf16.mxu0 0
        %1981 = vmatpush1.bf16.msra.mxu0 0
        %1982 = vmatprep.subr.bf16.mxu0 0
        %1983 = vmatpush1.bf16.msra.mxu0 0
        %1984 = vmatprep.subr.bf16.mxu0 0
        %1985 = vmatpush1.bf16.msra.mxu0 0
        %1986 = vmatprep.subr.bf16.mxu0 0
        %1987 = vmatpush1.bf16.msra.mxu0 0
        %1988 = vmatprep.subr.bf16.mxu0 0
        %1989 = vmatpush1.bf16.msra.mxu0 0
        %1990 = vmatprep.subr.bf16.mxu0 0
        %1991 = vmatpush1.bf16.msra.mxu0 0
        %1992 = vmatprep.subr.bf16.mxu0 0
        %1993 = vmatpush1.bf16.msra.mxu0 0
        %1994 = vmatprep.subr.bf16.mxu0 0
        %1995 = vmatpush1.bf16.msra.mxu0 0
        %1996 = vmatprep.subr.bf16.mxu0 0
        %1997 = vmatpush1.bf16.msra.mxu0 0
        %1998 = vmatprep.mubr.bf16.mxu0 0
        %1999 = vmatmul.mubr.bf16.gmra.mrb[0].mxu0 %v1964
        %v2000 = vpop.f32.mrb[0].mxu0
        %v2001 = vadd.f32 0.0, %v2000
        %v2002 = vpop.f32.mrb[0].mxu0
        %v2003 = vpop.f32.mrb[0].mxu0
        %v2004 = vpop.f32.mrb[0].mxu0
        %2005 = vdwg.mxu0
        %v2006 = vpack.c.bf16 %v2001, %v2001
        %v2007 = vld [vmem:[#allocation13 + $0x80] sm:$0xf]
        %v2008 = vld [vmem:[#allocation13 + $0x84] sm:$0xf]
        %v2009 = vld [vmem:[#allocation13 + $0x88] sm:$0xf]
        %v2010 = vld [vmem:[#allocation13 + $0x8c] sm:$0xf]
        %v2011 = vld [vmem:[#allocation13 + $0x90] sm:$0xf]
        %v2012 = vld [vmem:[#allocation13 + $0x94] sm:$0xf]
        %v2013 = vld [vmem:[#allocation13 + $0x98] sm:$0xf]
        %v2014 = vld [vmem:[#allocation13 + $0x9c] sm:$0xf]
        %v2015 = vld [vmem:[#allocation13 + $0xa0] sm:$0xf]
        %v2016 = vld [vmem:[#allocation13 + $0xa4] sm:$0xf]
        %v2017 = vld [vmem:[#allocation13 + $0xa8] sm:$0xf]
        %v2018 = vld [vmem:[#allocation13 + $0xac] sm:$0xf]
        %v2019 = vld [vmem:[#allocation13 + $0xb0] sm:$0xf]
        %v2020 = vld [vmem:[#allocation13 + $0xb4] sm:$0xf]
        %v2021 = vld [vmem:[#allocation13 + $0xb8] sm:$0xf]
        %v2022 = vld [vmem:[#allocation13 + $0xbc] sm:$0xf]
        %v2039 = vunpack.c.l.b16 %v2007
        %v2040 = vunpack.c.l.b16 %v2008
        %v2041 = vunpack.c.l.b16 %v2009
        %v2042 = vunpack.c.l.b16 %v2010
        %v2043 = vunpack.c.l.b16 %v2011
        %v2044 = vunpack.c.l.b16 %v2012
        %v2045 = vunpack.c.l.b16 %v2013
        %v2046 = vunpack.c.l.b16 %v2014
        %v2047 = vunpack.c.l.b16 %v2015
        %v2048 = vunpack.c.l.b16 %v2016
        %v2049 = vunpack.c.l.b16 %v2017
        %v2050 = vunpack.c.l.b16 %v2018
        %v2051 = vunpack.c.l.b16 %v2019
        %v2052 = vunpack.c.l.b16 %v2020
        %v2053 = vunpack.c.l.b16 %v2021
        %v2054 = vunpack.c.l.b16 %v2022
        %v2055 = vpack.c.b16 %v2040, %v2039
        %v2056 = vpack.c.b16 %v2042, %v2041
        %v2057 = vpack.c.b16 %v2044, %v2043
        %v2058 = vpack.c.b16 %v2046, %v2045
        %v2059 = vpack.c.b16 %v2048, %v2047
        %v2060 = vpack.c.b16 %v2050, %v2049
        %v2061 = vpack.c.b16 %v2052, %v2051
        %v2062 = vpack.c.b16 %v2054, %v2053
        %2071 = vmatprep.subr.bf16.mxu0 0
        %2072 = vmatpush1.bf16.msra.mxu0 %v2055
        %2073 = vmatprep.subr.bf16.mxu0 0
        %2074 = vmatpush1.bf16.msra.mxu0 %v2056
        %2075 = vmatprep.subr.bf16.mxu0 0
        %2076 = vmatpush1.bf16.msra.mxu0 %v2057
        %2077 = vmatprep.subr.bf16.mxu0 0
        %2078 = vmatpush1.bf16.msra.mxu0 %v2058
        %2079 = vmatprep.subr.bf16.mxu0 0
        %2080 = vmatpush1.bf16.msra.mxu0 %v2059
        %2081 = vmatprep.subr.bf16.mxu0 0
        %2082 = vmatpush1.bf16.msra.mxu0 %v2060
        %2083 = vmatprep.subr.bf16.mxu0 0
        %2084 = vmatpush1.bf16.msra.mxu0 %v2061
        %2085 = vmatprep.subr.bf16.mxu0 0
        %2086 = vmatpush1.bf16.msra.mxu0 %v2062
        %2087 = vmatprep.subr.bf16.mxu0 0
        %2088 = vmatpush1.bf16.msra.mxu0 0
        %2089 = vmatprep.subr.bf16.mxu0 0
        %2090 = vmatpush1.bf16.msra.mxu0 0
        %2091 = vmatprep.subr.bf16.mxu0 0
        %2092 = vmatpush1.bf16.msra.mxu0 0
        %2093 = vmatprep.subr.bf16.mxu0 0
        %2094 = vmatpush1.bf16.msra.mxu0 0
        %2095 = vmatprep.subr.bf16.mxu0 0
        %2096 = vmatpush1.bf16.msra.mxu0 0
        %2097 = vmatprep.subr.bf16.mxu0 0
        %2098 = vmatpush1.bf16.msra.mxu0 0
        %2099 = vmatprep.subr.bf16.mxu0 0
        %2100 = vmatpush1.bf16.msra.mxu0 0
        %2101 = vmatprep.subr.bf16.mxu0 0
        %2102 = vmatpush1.bf16.msra.mxu0 0
        %2103 = vmatprep.mubr.bf16.mxu0 0
        %2104 = vmatmul.mubr.bf16.gmra.mrb[0].mxu0 %v2006
        %v2105 = vpop.f32.mrb[0].mxu0
        %v2106 = vadd.f32 0.0, %v2105
        %v2107 = vpop.f32.mrb[0].mxu0
        %v2108 = vpop.f32.mrb[0].mxu0
        %v2109 = vpop.f32.mrb[0].mxu0
        %2110 = vdwg.mxu0
        %v2111 = vadd.f32 %v1905, %v2106
        %2112 = vmatprep.subr.bf16.mxu0 0
        %2113 = vmatpush1.bf16.xpose.msra.mxu0 %v1494
        %2114 = vmatprep.subr.bf16.mxu0 0
        %2115 = vmatpush1.bf16.xpose.msra.mxu0 0
        %2116 = vmatprep.subr.bf16.mxu0 0
        %2117 = vmatpush1.bf16.xpose.msra.mxu0 0
        %2118 = vmatprep.subr.bf16.mxu0 0
        %2119 = vmatpush1.bf16.xpose.msra.mxu0 0
        %2120 = vmatprep.subr.bf16.mxu0 0
        %2121 = vmatpush1.bf16.xpose.msra.mxu0 0
        %2122 = vmatprep.subr.bf16.mxu0 0
        %2123 = vmatpush1.bf16.xpose.msra.mxu0 0
        %2124 = vmatprep.subr.bf16.mxu0 0
        %2125 = vmatpush1.bf16.xpose.msra.mxu0 0
        %2126 = vmatprep.subr.bf16.mxu0 0
        %2127 = vmatpush1.bf16.xpose.msra.mxu0 0
        %2128 = vmatprep.subr.bf16.mxu0 0
        %2129 = vmatpush1.bf16.xpose.msra.mxu0 0
        %2130 = vmatprep.subr.bf16.mxu0 0
        %2131 = vmatpush1.bf16.xpose.msra.mxu0 0
        %2132 = vmatprep.subr.bf16.mxu0 0
        %2133 = vmatpush1.bf16.xpose.msra.mxu0 0
        %2134 = vmatprep.subr.bf16.mxu0 0
        %2135 = vmatpush1.bf16.xpose.msra.mxu0 0
        %2136 = vmatprep.subr.bf16.mxu0 0
        %2137 = vmatpush1.bf16.xpose.msra.mxu0 0
        %2138 = vmatprep.subr.bf16.mxu0 0
        %2139 = vmatpush1.bf16.xpose.msra.mxu0 0
        %2140 = vmatprep.subr.bf16.mxu0 0
        %2141 = vmatpush1.bf16.xpose.msra.mxu0 0
        %2142 = vmatprep.subr.bf16.mxu0 0
        %2143 = vmatpush1.bf16.xpose.msra.mxu0 0
        %2144 = vmatprep.mubr.bf16.mxu0 0
        %2145 = vmatmul.mubr.bf16.gmra.mrb[0].mxu0 %v1498
        %v2146 = vpop.f32.mrb[0].mxu0
        %v2147 = vadd.f32 0.0, %v2146
        %v2148 = vpop.f32.mrb[0].mxu0
        %v2149 = vpop.f32.mrb[0].mxu0
        %v2150 = vpop.f32.mrb[0].mxu0
        %2151 = vdwg.mxu0
        %v2152 = vsel %vm1546, -1e+09, %v2147
        %v2153 = vsel %vm1548, %v2152, -inf
        %2154 = vmax.xlane.f32.xlu0 %v2153
        %v2155 = vpop.xlane.xlu0 %2154
        %v2156 = vsub.f32 %v2152, %v2155
        %v2157 = vmul.f32 %v2156, 1.442695
        %v2158 = vpow.pop %v2157
        %v2159 = vsel %vm1548, %v2158, 0.0
        %2160 = vadd.xlane.f32.xlu0 %v2159
        %v2161 = vpop.xlane.xlu0 %2160
        %v2162 = vrcp.pop %v2161
        %v2163 = vmul.f32 %v2158, %v2162
        %v2164 = vpack.c.bf16 %v2163, %v2163
        %v2166 = vsel %vm1548, %v2164, 0
        %2168 = vmatprep.subr.bf16.mxu0 0
        %2169 = vmatpush1.bf16.msra.mxu0 %v1490
        %2170 = vmatprep.subr.bf16.mxu0 0
        %2171 = vmatpush1.bf16.msra.mxu0 0
        %2172 = vmatprep.subr.bf16.mxu0 0
        %2173 = vmatpush1.bf16.msra.mxu0 0
        %2174 = vmatprep.subr.bf16.mxu0 0
        %2175 = vmatpush1.bf16.msra.mxu0 0
        %2176 = vmatprep.subr.bf16.mxu0 0
        %2177 = vmatpush1.bf16.msra.mxu0 0
        %2178 = vmatprep.subr.bf16.mxu0 0
        %2179 = vmatpush1.bf16.msra.mxu0 0
        %2180 = vmatprep.subr.bf16.mxu0 0
        %2181 = vmatpush1.bf16.msra.mxu0 0
        %2182 = vmatprep.subr.bf16.mxu0 0
        %2183 = vmatpush1.bf16.msra.mxu0 0
        %2184 = vmatprep.subr.bf16.mxu0 0
        %2185 = vmatpush1.bf16.msra.mxu0 0
        %2186 = vmatprep.subr.bf16.mxu0 0
        %2187 = vmatpush1.bf16.msra.mxu0 0
        %2188 = vmatprep.subr.bf16.mxu0 0
        %2189 = vmatpush1.bf16.msra.mxu0 0
        %2190 = vmatprep.subr.bf16.mxu0 0
        %2191 = vmatpush1.bf16.msra.mxu0 0
        %2192 = vmatprep.subr.bf16.mxu0 0
        %2193 = vmatpush1.bf16.msra.mxu0 0
        %2194 = vmatprep.subr.bf16.mxu0 0
        %2195 = vmatpush1.bf16.msra.mxu0 0
        %2196 = vmatprep.subr.bf16.mxu0 0
        %2197 = vmatpush1.bf16.msra.mxu0 0
        %2198 = vmatprep.subr.bf16.mxu0 0
        %2199 = vmatpush1.bf16.msra.mxu0 0
        %2200 = vmatprep.mubr.bf16.mxu0 0
        %2201 = vmatmul.mubr.bf16.gmra.mrb[0].mxu0 %v2166
        %v2202 = vpop.f32.mrb[0].mxu0
        %v2203 = vadd.f32 0.0, %v2202
        %v2204 = vpop.f32.mrb[0].mxu0
        %v2205 = vpop.f32.mrb[0].mxu0
        %v2206 = vpop.f32.mrb[0].mxu0
        %2207 = vdwg.mxu0
        %v2208 = vpack.c.bf16 %v2203, %v2203
        %v2209 = vld [vmem:[#allocation13 + $0xc0] sm:$0xf]
        %v2210 = vld [vmem:[#allocation13 + $0xc4] sm:$0xf]
        %v2211 = vld [vmem:[#allocation13 + $0xc8] sm:$0xf]
        %v2212 = vld [vmem:[#allocation13 + $0xcc] sm:$0xf]
        %v2213 = vld [vmem:[#allocation13 + $0xd0] sm:$0xf]
        %v2214 = vld [vmem:[#allocation13 + $0xd4] sm:$0xf]
        %v2215 = vld [vmem:[#allocation13 + $0xd8] sm:$0xf]
        %v2216 = vld [vmem:[#allocation13 + $0xdc] sm:$0xf]
        %v2217 = vld [vmem:[#allocation13 + $0xe0] sm:$0xf]
        %v2218 = vld [vmem:[#allocation13 + $0xe4] sm:$0xf]
        %v2219 = vld [vmem:[#allocation13 + $0xe8] sm:$0xf]
        %v2220 = vld [vmem:[#allocation13 + $0xec] sm:$0xf]
        %v2221 = vld [vmem:[#allocation13 + $0xf0] sm:$0xf]
        %v2222 = vld [vmem:[#allocation13 + $0xf4] sm:$0xf]
        %v2223 = vld [vmem:[#allocation13 + $0xf8] sm:$0xf]
        %v2224 = vld [vmem:[#allocation13 + $0xfc] sm:$0xf]
        %v2241 = vunpack.c.l.b16 %v2209
        %v2242 = vunpack.c.l.b16 %v2210
        %v2243 = vunpack.c.l.b16 %v2211
        %v2244 = vunpack.c.l.b16 %v2212
        %v2245 = vunpack.c.l.b16 %v2213
        %v2246 = vunpack.c.l.b16 %v2214
        %v2247 = vunpack.c.l.b16 %v2215
        %v2248 = vunpack.c.l.b16 %v2216
        %v2249 = vunpack.c.l.b16 %v2217
        %v2250 = vunpack.c.l.b16 %v2218
        %v2251 = vunpack.c.l.b16 %v2219
        %v2252 = vunpack.c.l.b16 %v2220
        %v2253 = vunpack.c.l.b16 %v2221
        %v2254 = vunpack.c.l.b16 %v2222
        %v2255 = vunpack.c.l.b16 %v2223
        %v2256 = vunpack.c.l.b16 %v2224
        %v2257 = vpack.c.b16 %v2242, %v2241
        %v2258 = vpack.c.b16 %v2244, %v2243
        %v2259 = vpack.c.b16 %v2246, %v2245
        %v2260 = vpack.c.b16 %v2248, %v2247
        %v2261 = vpack.c.b16 %v2250, %v2249
        %v2262 = vpack.c.b16 %v2252, %v2251
        %v2263 = vpack.c.b16 %v2254, %v2253
        %v2264 = vpack.c.b16 %v2256, %v2255
        %2273 = vmatprep.subr.bf16.mxu0 0
        %2274 = vmatpush1.bf16.msra.mxu0 %v2257
        %2275 = vmatprep.subr.bf16.mxu0 0
        %2276 = vmatpush1.bf16.msra.mxu0 %v2258
        %2277 = vmatprep.subr.bf16.mxu0 0
        %2278 = vmatpush1.bf16.msra.mxu0 %v2259
        %2279 = vmatprep.subr.bf16.mxu0 0
        %2280 = vmatpush1.bf16.msra.mxu0 %v2260
        %2281 = vmatprep.subr.bf16.mxu0 0
        %2282 = vmatpush1.bf16.msra.mxu0 %v2261
        %2283 = vmatprep.subr.bf16.mxu0 0
        %2284 = vmatpush1.bf16.msra.mxu0 %v2262
        %2285 = vmatprep.subr.bf16.mxu0 0
        %2286 = vmatpush1.bf16.msra.mxu0 %v2263
        %2287 = vmatprep.subr.bf16.mxu0 0
        %2288 = vmatpush1.bf16.msra.mxu0 %v2264
        %2289 = vmatprep.subr.bf16.mxu0 0
        %2290 = vmatpush1.bf16.msra.mxu0 0
        %2291 = vmatprep.subr.bf16.mxu0 0
        %2292 = vmatpush1.bf16.msra.mxu0 0
        %2293 = vmatprep.subr.bf16.mxu0 0
        %2294 = vmatpush1.bf16.msra.mxu0 0
        %2295 = vmatprep.subr.bf16.mxu0 0
        %2296 = vmatpush1.bf16.msra.mxu0 0
        %2297 = vmatprep.subr.bf16.mxu0 0
        %2298 = vmatpush1.bf16.msra.mxu0 0
        %2299 = vmatprep.subr.bf16.mxu0 0
        %2300 = vmatpush1.bf16.msra.mxu0 0
        %2301 = vmatprep.subr.bf16.mxu0 0
        %2302 = vmatpush1.bf16.msra.mxu0 0
        %2303 = vmatprep.subr.bf16.mxu0 0
        %2304 = vmatpush1.bf16.msra.mxu0 0
        %2305 = vmatprep.mubr.bf16.mxu0 0
        %2306 = vmatmul.mubr.bf16.gmra.mrb[0].mxu0 %v2208
        %v2307 = vpop.f32.mrb[0].mxu0
        %v2308 = vadd.f32 0.0, %v2307
        %v2309 = vpop.f32.mrb[0].mxu0
        %v2310 = vpop.f32.mrb[0].mxu0
        %v2311 = vpop.f32.mrb[0].mxu0
        %2312 = vdwg.mxu0
        %v2313 = vadd.f32 %v2111, %v2308
        %v2314 = vld [vmem:[%s11] sm:$0x1]
        %v2316 = vlaneseq
        %v2317 = vshrl.u32 %v2316, 7
        %v2318 = vsub.s32 0, %v2317
        %v2319 = vrot.slane %v2314, %v2318
        %v2321 = vadd.f32 %v2313, %v2319
        %2322 = vst [vmem:[%s574] sm:$0xff] %v2321
        %s2323 = sand.u32 %s314, 1
        %s2324 = scalar_lea.sflag [#allocation4], %s2323
        %s2325 = sand.u32 %s314, 1
        %s2326 = smul.addr %s2325, 8
        %s2327 = scalar_lea.vmem [#allocation14], %s2326
        // Predicated region
        $region97: #{tpu_custom_call.1} parent=67 // pred_check
          %p2328 = pneg %p324
        $region98: #{tpu_custom_call.1} parent=67 // pred_check_branch
          %2330 = sbr.rel (%p2328) target = $region100
        $region99: #{tpu_custom_call.1} parent=67 // pred_region
          %s2332 = ssub.s32 128, 128
          %2333 = vsyncadd %s2324, %s2332
          %s2334 = smul.addr %s34, 128
          %s2335 = scalar_lea.hbm %s12, %s2334
          %s2337 = sshll.u32 %s2327, 4
          %s2338 = int_to_ptr.vmem [resolvable:$true] %s2337
          %2340 = dma.vmem_to_hbm [thread:$0]  %s2338, 128, %s2335, %s2324
        $region100: #{tpu_custom_call.1} parent=67 // pred_fallthru
          _
      $region68: #{tpu_custom_call.1} parent=5 // pred_fallthru
        _
      %p2341 = scmp.le.s32.totalorder 2, %s29
      // Predicated region
      $region101: #{tpu_custom_call.1} parent=5 // pred_check
        %p2342 = pneg %p2341
      $region102: #{tpu_custom_call.1} parent=5 // pred_check_branch
        %2344 = sbr.rel (%p2342) target = $region104
      $region103: #{tpu_custom_call.1} parent=5 // pred_region
        %s2345 = ssub.s32 %s29, 2
        // Predicated region
        $region105: #{tpu_custom_call.1} parent=103 // pred_check
          %p2346 = pneg %p330
        $region106: #{tpu_custom_call.1} parent=103 // pred_check_branch
          %2348 = sbr.rel (%p2346) target = $region108
        $region107: #{tpu_custom_call.1} parent=103 // pred_region
          %s2349 = sand.u32 %s315, 1
          %s2350 = scalar_lea.sflag [#allocation4], %s2349
          %s2351 = sand.u32 %s315, 1
          %s2352 = smul.addr %s2351, 8
          %s2353 = scalar_lea.vmem [#allocation14], %s2352
          %2354 = dma.done %s2350, 128
        $region108: #{tpu_custom_call.1} parent=103 // pred_fallthru
          _
      $region104: #{tpu_custom_call.1} parent=5 // pred_fallthru
        _
    $region6: #{tpu_custom_call.1} parent=1 // loop_footer
      %s33 = sadd.s32 1, %s29
    $region7: #{tpu_custom_call.1} parent=1 // loop_footer_branch
      %28 = sbr.rel target = $region3
    $region8: #{tpu_custom_call.1} parent=1 // loop_exit
      _
    %2355 = vsyncpa [#allocation3], 1
    %s2356 = scalar_lea.sflag [#allocation3], 1
    %2357 = vsyncpa %s2356, 1
    %2358 = vsyncpa [#allocation6], 1
    %s2359 = scalar_lea.sflag [#allocation6], 1
    %2360 = vsyncpa %s2359, 1
    %2361 = vsyncpa [#allocation9], 1
    %2362 = vsyncpa [#allocation12], 1
    %2363 = vsyncpa [#allocation4], 1
    %s2364 = scalar_lea.sflag [#allocation4], 1
    %2365 = vsyncpa %s2364, 1

</llo_original>
